<compile_context>
chip_gen: v6e
topology: v6e:2x2x1
jax: 0.10.0
libtpu: 0.0.40
codegen_flags: <defaults>
</compile_context>

<pallas_src>
import functools

import jax
import jax.numpy as jnp
from jax.experimental import pallas as pl
from jax.experimental.pallas import tpu as pltpu


def _round_up(x: int, m: int) -> int:
    return (x + m - 1) // m * m


def _time2vec_kernel(tau_ref, params_ref, o_ref, *, clip_min, clip_max):
    # tau_ref: (TM, 1) f32, params_ref: (2, D) f32, o_ref: (TM, D) out_dtype.
    tau = tau_ref[...]                     # (TM, 1)
    w = params_ref[0:1, :]                 # (1, D)   init_scale already folded in
    phi = params_ref[1:2, :]               # (1, D)

    lin = tau * w + phi                    # (TM, D) broadcast FMA on the VPU

    # Periodic term for every column; column 0 is overwritten below (the
    # wasted cos on 1/D of the columns is cheaper than iota+compare+select).
    o_ref[...] = jnp.cos(lin).astype(o_ref.dtype)

    # Linear ("time") term in column 0, optionally clipped.
    col0 = lin[:, 0:1]
    if clip_min is not None or clip_max is not None:
        col0 = jnp.clip(col0, clip_min, clip_max)
    o_ref[:, 0:1] = col0.astype(o_ref.dtype)


def time2vec_forward(tau, w0, phi0, w, phi, *, init_scale=1.0,
                     clip_min=None, clip_max=None, block_rows=1024,
                     out_dtype=None):
    """tau: (B, S). Returns (B, S, D) with D = 1 + w.shape[-1]."""
    B, S = tau.shape
    D = 1 + w.shape[-1]
    N = B * S
    out_dtype = tau.dtype if out_dtype is None else out_dtype

    # Large sublane-aligned row tile; clamp for small inputs. Output tile is
    # tm*D*4 bytes -- default keeps it <= ~4 MiB per buffer so double
    # buffering fits the scoped-VMEM default on every generation (incl. the
    # 64 MiB-VMEM v7x). Sweep block_rows 512-2048 on real shapes.
    tm = max(8, min(_round_up(block_rows, 8), _round_up(N, 8)))
    n_pad = _round_up(N, tm)
    grid = (n_pad // tm,)

    tau_flat = tau.reshape(N, 1).astype(jnp.float32)
    if n_pad != N:
        tau_flat = jnp.pad(tau_flat, ((0, n_pad - N), (0, 0)))

    # Fused (2, D) parameter slab: row 0 = init_scale*[w0, w], row 1 = [phi0, phi].
    scale = jnp.float32(1.0 if init_scale is None else init_scale)
    w_row = jnp.concatenate(
        [w0.reshape(1, 1), w.reshape(1, D - 1)], axis=1).astype(jnp.float32) * scale
    phi_row = jnp.concatenate(
        [phi0.reshape(1, 1), phi.reshape(1, D - 1)], axis=1).astype(jnp.float32)
    params = jnp.concatenate([w_row, phi_row], axis=0)   # (2, D)

    kernel = functools.partial(
        _time2vec_kernel, clip_min=clip_min, clip_max=clip_max)

    out_flat = pl.pallas_call(
        kernel,
        out_shape=jax.ShapeDtypeStruct((n_pad, D), out_dtype),
        grid_spec=pltpu.PrefetchScalarGridSpec(
            num_scalar_prefetch=0,
            grid=grid,
            in_specs=[
                pl.BlockSpec((tm, 1), lambda i: (i, 0)),   # per-row tau
                pl.BlockSpec((2, D), lambda i: (0, 0)),    # resident params
            ],
            out_specs=pl.BlockSpec((tm, D), lambda i: (i, 0)),
        ),
        # Row grid is fully independent -> shard across TensorCores (v7x).
        compiler_params=pltpu.CompilerParams(
            dimension_semantics=("parallel",)),
    )(tau_flat, params)

    if n_pad != N:
        out_flat = out_flat[:N]
    return out_flat.reshape(B, S, D)


def time2vec_reference(tau, w0, phi0, w, phi, *, init_scale=1.0,
                       clip_min=None, clip_max=None):
    if init_scale is not None:
        tau = tau * init_scale
    tau = tau[..., None]                       # (B, S, 1)
    linear_1 = tau @ w0 + phi0                 # (B, S, 1)
    linear_2 = tau @ w                         # (B, S, D-1)
    if clip_min is not None or clip_max is not None:
        linear_1 = jnp.clip(linear_1, clip_min, clip_max)
    periodic = jnp.cos(linear_2 + phi)
    return jnp.concatenate([linear_1, periodic], axis=-1)


def _check(B, S, D, *, block_rows, init_scale, clip_min, clip_max, key):
    k_tau, k_w0, k_phi0, k_w, k_phi = jax.random.split(key, 5)
    tau = jax.random.normal(k_tau, (B, S), dtype=jnp.float32)
    w0 = jax.random.normal(k_w0, (1, 1), dtype=jnp.float32)
    phi0 = jax.random.normal(k_phi0, (1,), dtype=jnp.float32)
    w = jax.random.normal(k_w, (1, D - 1), dtype=jnp.float32)
    phi = jax.random.normal(k_phi, (D - 1,), dtype=jnp.float32)

    out = time2vec_forward(tau, w0, phi0, w, phi, init_scale=init_scale,
                           clip_min=clip_min, clip_max=clip_max,
                           block_rows=block_rows)
    out = jax.block_until_ready(out)
    ref = time2vec_reference(tau, w0, phi0, w, phi, init_scale=init_scale,
                             clip_min=clip_min, clip_max=clip_max)
    assert out.shape == (B, S, D)
    assert jnp.allclose(out, ref, atol=1e-5, rtol=1e-5), "mismatch vs reference"


if __name__ == "__main__":
    key = jax.random.PRNGKey(0)
    k1, k2 = jax.random.split(key)
    # Multi-step grid + row-padding path (N=200 -> 4 tiles of 64 rows).
    _check(2, 100, 256, block_rows=64, init_scale=0.5,
           clip_min=None, clip_max=None, key=k1)
    # Single-tile path with clipping and init_scale=None (tile clamps to 16 rows).
    _check(2, 8, 128, block_rows=1024, init_scale=None,
           clip_min=-0.5, clip_max=0.75, key=k2)
    print("KERNEL_OK")
</pallas_src>

<mosaic_0001>
module attributes {stable_mosaic.version = 11 : i64} {
  func.func @_time2vec_kernel(%arg0: i32, %arg1: memref<64x1xf32, #tpu.memory_space<vmem>>, %arg2: memref<2x256xf32, #tpu.memory_space<vmem>>, %arg3: memref<64x256xf32, #tpu.memory_space<vmem>>) attributes {dimension_semantics = [#tpu.dimension_semantics<parallel>], iteration_bounds = array<i64: 4>, scalar_prefetch = 0 : i64, scratch_operands = 0 : i64, tpu.core_type = #tpu.core_type<tc>, window_params = [{transform_indices = @transform_0, window_bounds = array<i64: 64, 1>}, {pipeline_mode = #tpu.pipeline_mode<synchronous>, transform_indices = @transform_1, window_bounds = array<i64: 2, 256>}, {transform_indices = @transform_2, window_bounds = array<i64: 64, 256>}]} {
    %c0 = arith.constant 0 : index
    %c0_0 = arith.constant 0 : index
    %0 = vector.load %arg1[%c0, %c0_0] : memref<64x1xf32, #tpu.memory_space<vmem>>, vector<64x1xf32>
    %c0_1 = arith.constant 0 : index
    %c0_2 = arith.constant 0 : index
    %1 = vector.load %arg2[%c0_1, %c0_2] : memref<2x256xf32, #tpu.memory_space<vmem>>, vector<1x256xf32>
    %c1 = arith.constant 1 : index
    %c0_3 = arith.constant 0 : index
    %2 = vector.load %arg2[%c1, %c0_3] : memref<2x256xf32, #tpu.memory_space<vmem>>, vector<1x256xf32>
    %3 = vector.broadcast %0 : vector<64x1xf32> to vector<64x256xf32>
    %4 = vector.broadcast %1 : vector<1x256xf32> to vector<64x256xf32>
    %5 = arith.mulf %3, %4 : vector<64x256xf32>
    %6 = vector.broadcast %2 : vector<1x256xf32> to vector<64x256xf32>
    %7 = arith.addf %5, %6 : vector<64x256xf32>
    %8 = math.cos %7 : vector<64x256xf32>
    %c0_4 = arith.constant 0 : index
    %c0_5 = arith.constant 0 : index
    %9 = vector.load %arg3[%c0_4, %c0_5] : memref<64x256xf32, #tpu.memory_space<vmem>>, vector<64x256xf32>
    tpu.vector_store %arg3[%c0_4, %c0_5], %8 {strides = array<i32>} : memref<64x256xf32, #tpu.memory_space<vmem>>, vector<64x256xf32>,
    %10 = vector.extract_strided_slice %7 {offsets = [0, 0], sizes = [64, 1], strides = [1, 1]} : vector<64x256xf32> to vector<64x1xf32>
    %c0_6 = arith.constant 0 : index
    %c0_7 = arith.constant 0 : index
    %11 = vector.load %arg3[%c0_6, %c0_7] : memref<64x256xf32, #tpu.memory_space<vmem>>, vector<64x1xf32>
    tpu.vector_store %arg3[%c0_6, %c0_7], %10 {strides = array<i32>} : memref<64x256xf32, #tpu.memory_space<vmem>>, vector<64x1xf32>,
    return
  }
  func.func @transform_0(%arg0: i32) -> (i32, i32) {
    %c0_i32 = arith.constant 0 : i32
    %c0_i32_0 = arith.constant 0 : i32
    return %arg0, %c0_i32 : i32, i32
  }
  func.func @transform_1(%arg0: i32) -> (i32, i32) {
    %c0_i32 = arith.constant 0 : i32
    %c0_i32_0 = arith.constant 0 : i32
    %c0_i32_1 = arith.constant 0 : i32
    return %c0_i32, %c0_i32_0 : i32, i32
  }
  func.func @transform_2(%arg0: i32) -> (i32, i32) {
    %c0_i32 = arith.constant 0 : i32
    %c0_i32_0 = arith.constant 0 : i32
    return %arg0, %c0_i32 : i32, i32
  }
}

</mosaic_0001>

<llo_original>
// kernel: tpu_custom_call.1
$region0: #{tpu_custom_call.1}
  #allocation0 [shape = 'u32[]', space=smem, size = 0x4, offset = 0x4, fixed_abs, tag = 'smem constant byte address 0x4 - core index']
  #allocation1 [shape = 'u32[144,128]{1,0:T(1,128)}', space=vmem, size = 0x12000, scoped, tag = 'internal scratch']
  %s0 = inlined_call_operand.vmem [shape: f32[256,1], index: 0, kind: input, shape index: {}]
  %s1 = inlined_call_operand.vmem [shape: f32[2,256], index: 1, kind: input, shape index: {}]
  %s2 = inlined_call_operand.hbm [shape: f32[256,256], index: 2, kind: output, shape index: {}]
  %s3 = sld [smem:[#allocation0]]
  $region41: #{tpu_custom_call.1} parent=0
    _
  %s5 = ssub.s32 1, %s3
  %s6 = scalar_select 0, %s5, %s3
  $region1: #{tpu_custom_call.1} parent=0
    #allocation2 [shape = 'u8[131072]{0}', space=vmem, size = 0x20000, scoped, tag = 'output window, operand 0']
    #allocation3 [shape = 's32[2]{0}', space=sflag, size = 0x8, scoped, tag = 'scoped memory for tpu_custom_call.1']
    %7 = vsyncpa [#allocation3], 0
    %s8 = scalar_lea.sflag [#allocation3], 1
    %9 = vsyncpa %s8, 0
    loop: start=0, step=1, limit=6
    $region2: #{tpu_custom_call.1} parent=1 // loop_pre_header
      _
    $region3: #{tpu_custom_call.1} parent=1 // loop_header
      %s11 = sphi 0, %s15
      %p12 = scmp.ge.s32.totalorder %s11, 6
      %s21 = sphi 0, %s23
      %s24 = sphi 0, %s21
      %s25 = sphi 0, %s24
      %s41 = sphi 0, %s25
      %s45 = sphi 0, %s45
      %s47 = sphi 0, %s45
      %s48 = sphi 0, %s47
      %s62 = sphi 0, %s48
      %s68 = sphi 0, %s70
      %s71 = sphi 0, %s68
      %s72 = sphi 0, %s71
      %s88 = sphi 0, %s72
    $region4: #{tpu_custom_call.1} parent=1 // loop_header_branch
      %14 = sbr.rel (%p12) target = $region8
    $region5: #{tpu_custom_call.1} parent=1 // loop_body
      %s16 = ssub.s32 %s11, 1
      %s17 = ssub.s32 %s11, 2
      %s18 = sadd.s32 %s11, 1
      %s19 = ssub.s32 %s11, %s18
      %p20 = scmp.eq.s32.totalorder %s19, 0
      %s22 = sadd.s32 %s21, 1
      %s23 = scalar_select %p20, %s21, %s22
      %p26 = pneg %p20
      %p27 = scmp.eq.s32.totalorder %s11, 3
      %p28 = por %p26, %p27
      %p29 = scmp.ne.s32.totalorder %s21, %s24
      %p30 = scmp.eq.s32.totalorder %s11, 0
      %p31 = por %p29, %p30
      %p32 = scmp.ne.s32.totalorder %s21, %s24
      %p33 = scmp.eq.s32.totalorder %s16, 3
      %p34 = por %p32, %p33
      %p35 = scmp.ne.s32.totalorder %s24, %s25
      %p36 = scmp.eq.s32.totalorder %s16, 0
      %p37 = por %p35, %p36
      %p38 = scmp.ne.s32.totalorder %s24, %s25
      %p39 = scmp.eq.s32.totalorder %s17, 3
      %p40 = por %p38, %p39
      %p42 = scmp.ne.s32.totalorder %s25, %s41
      %p43 = scmp.eq.s32.totalorder %s17, 0
      %p44 = por %p42, %p43
      %s46 = sadd.s32 %s45, 1
      %p49 = scmp.eq.s32.totalorder %s11, 3
      %p50 = scmp.ne.s32.totalorder %s45, %s47
      %p51 = scmp.eq.s32.totalorder %s11, 0
      %p52 = por %p50, %p51
      %p53 = scmp.ne.s32.totalorder %s45, %s47
      %p54 = scmp.eq.s32.totalorder %s16, 3
      %p55 = por %p53, %p54
      %p56 = scmp.ne.s32.totalorder %s47, %s48
      %p57 = scmp.eq.s32.totalorder %s16, 0
      %p58 = por %p56, %p57
      %p59 = scmp.ne.s32.totalorder %s47, %s48
      %p60 = scmp.eq.s32.totalorder %s17, 3
      %p61 = por %p59, %p60
      %p63 = scmp.ne.s32.totalorder %s48, %s62
      %p64 = scmp.eq.s32.totalorder %s17, 0
      %p65 = por %p63, %p64
      %s66 = ssub.s32 %s11, %s18
      %p67 = scmp.eq.s32.totalorder %s66, 0
      %s69 = sadd.s32 %s68, 1
      %s70 = scalar_select %p67, %s68, %s69
      %p73 = pneg %p67
      %p74 = scmp.eq.s32.totalorder %s11, 3
      %p75 = por %p73, %p74
      %p76 = scmp.ne.s32.totalorder %s68, %s71
      %p77 = scmp.eq.s32.totalorder %s11, 0
      %p78 = por %p76, %p77
      %p79 = scmp.ne.s32.totalorder %s68, %s71
      %p80 = scmp.eq.s32.totalorder %s16, 3
      %p81 = por %p79, %p80
      %p82 = scmp.ne.s32.totalorder %s71, %s72
      %p83 = scmp.eq.s32.totalorder %s16, 0
      %p84 = por %p82, %p83
      %p85 = scmp.ne.s32.totalorder %s71, %s72
      %p86 = scmp.eq.s32.totalorder %s17, 3
      %p87 = por %p85, %p86
      %p89 = scmp.ne.s32.totalorder %s72, %s88
      %p90 = scmp.eq.s32.totalorder %s17, 0
      %p91 = por %p89, %p90
      %p92 = scmp.le.s32.totalorder 1, %s11
      %p93 = scmp.lt.s32.totalorder %s11, 5
      %p94 = pnand %p92, %p93
      %p95 = pneg %p94
      // Predicated region
      $region9: #{tpu_custom_call.1} parent=5 // pred_check
        _
      $region10: #{tpu_custom_call.1} parent=5 // pred_check_branch
        %97 = sbr.rel (%p94) target = $region12
      $region11: #{tpu_custom_call.1} parent=5 // pred_region
        %s98 = ssub.s32 %s11, 1
        // Predicated region
        $region13: #{tpu_custom_call.1} parent=11 // pred_check
          %p99 = pneg %p58
        $region14: #{tpu_custom_call.1} parent=11 // pred_check_branch
          %101 = sbr.rel (%p99) target = $region16
        $region15: #{tpu_custom_call.1} parent=11 // pred_region
          _
        $region16: #{tpu_custom_call.1} parent=11 // pred_fallthru
          _
      $region12: #{tpu_custom_call.1} parent=5 // pred_fallthru
        _
      %p102 = scmp.lt.s32.totalorder %s11, 4
      // Predicated region
      $region17: #{tpu_custom_call.1} parent=5 // pred_check
        %p103 = pneg %p102
      $region18: #{tpu_custom_call.1} parent=5 // pred_check_branch
        %105 = sbr.rel (%p103) target = $region20
      $region19: #{tpu_custom_call.1} parent=5 // pred_region
        // Predicated region
        $region21: #{tpu_custom_call.1} parent=19 // pred_check
          %p106 = pneg %p31
        $region22: #{tpu_custom_call.1} parent=19 // pred_check_branch
          %108 = sbr.rel (%p106) target = $region24
        $region23: #{tpu_custom_call.1} parent=19 // pred_region
          %s109 = smul.u32 8, %s11
          %p110 = scmp.lt.s32.totalorder %s109, 31
          %s111 = scalar_select %p110, %s109, 31
          %s112 = smul.addr %s111, 8
          %s113 = scalar_lea.vmem %s0, %s112
          %s114 = smul.u32 8, %s11
        $region24: #{tpu_custom_call.1} parent=19 // pred_fallthru
          _
      $region20: #{tpu_custom_call.1} parent=5 // pred_fallthru
        _
      %p115 = scmp.le.s32.totalorder 1, %s11
      %p116 = scmp.lt.s32.totalorder %s11, 5
      %p117 = pnand %p115, %p116
      %p118 = pneg %p117
      // Predicated region
      $region25: #{tpu_custom_call.1} parent=5 // pred_check
        _
      $region26: #{tpu_custom_call.1} parent=5 // pred_check_branch
        %120 = sbr.rel (%p117) target = $region28
      $region27: #{tpu_custom_call.1} parent=5 // pred_region
        %s121 = ssub.s32 %s11, 1
        %s122 = smul.u32 8, %s16
        %p123 = scmp.lt.s32.totalorder %s122, 31
        %s124 = scalar_select %p123, %s122, 31
        %s125 = smul.addr %s124, 8
        %s126 = scalar_lea.vmem %s0, %s125
        %p127 = pneg %p37
        %p128 = pneg %p34
        %p129 = pneg %p58
        %p130 = pneg %p55
        %p131 = pneg %p84
        %p132 = pneg %p81
        %s133 = sand.u32 %s71, 1
        %s134 = scalar_lea.sflag [#allocation3], %s133
        %s135 = sand.u32 %s71, 1
        %s136 = smul.addr %s135, 128
        %s137 = scalar_lea.vmem [#allocation2], %s136
        %s138 = smul.u32 8, %s16
        %p139 = scmp.lt.s32.totalorder %s138, 31
        %s140 = scalar_select %p139, %s138, 31
        %s141 = smul.addr %s140, 8
        %s142 = scalar_lea.vmem %s0, %s141
        %s143 = smul.u32 8, %s16
        %s144 = smul.u32 8, %s16
        %v145 = vld [vmem:[%s142] sm:$0xff]
        %v146 = vld [vmem:[%s142 + $0x8] sm:$0xff]
        %v147 = vld [vmem:[%s142 + $0x10] sm:$0xff]
        %v148 = vld [vmem:[%s142 + $0x18] sm:$0xff]
        %v149 = vld [vmem:[%s142 + $0x20] sm:$0xff]
        %v150 = vld [vmem:[%s142 + $0x28] sm:$0xff]
        %v151 = vld [vmem:[%s142 + $0x30] sm:$0xff]
        %v152 = vld [vmem:[%s142 + $0x38] sm:$0xff]
        %v153 = vld [vmem:[%s1] ss:$2 sm:$0x3]
        %s154 = scalar_lea.vmem %s1, 1
        %v155 = vld [vmem:[%s154] ss:$2 sm:$0x3]
        %157 = vset.pattern.permute.xlu0 0
        %158 = vperm.xlu0 %157, %v145
        %v159 = vpop.permute.xlu0 %158
        %162 = vset.pattern.permute.xlu0 0
        %163 = vperm.xlu0 %162, %v146
        %v164 = vpop.permute.xlu0 %163
        %167 = vset.pattern.permute.xlu0 0
        %168 = vperm.xlu0 %167, %v147
        %v169 = vpop.permute.xlu0 %168
        %172 = vset.pattern.permute.xlu0 0
        %173 = vperm.xlu0 %172, %v148
        %v174 = vpop.permute.xlu0 %173
        %177 = vset.pattern.permute.xlu0 0
        %178 = vperm.xlu0 %177, %v149
        %v179 = vpop.permute.xlu0 %178
        %182 = vset.pattern.permute.xlu0 0
        %183 = vperm.xlu0 %182, %v150
        %v184 = vpop.permute.xlu0 %183
        %187 = vset.pattern.permute.xlu0 0
        %188 = vperm.xlu0 %187, %v151
        %v189 = vpop.permute.xlu0 %188
        %192 = vset.pattern.permute.xlu0 0
        %193 = vperm.xlu0 %192, %v152
        %v194 = vpop.permute.xlu0 %193
        %v197 = vlaneseq
        %v198 = vshrl.u32 %v197, 7
        %v199 = vsub.s32 0, %v198
        %v200 = vrot.slane %v153, %v199
        %v201 = vlaneseq
        %v202 = vshrl.u32 %v201, 7
        %v203 = vsub.s32 1, %v202
        %v204 = vrot.slane %v153, %v203
        %v207 = vmul.f32 %v159, %v200
        %v208 = vmul.f32 %v159, %v204
        %v209 = vmul.f32 %v164, %v200
        %v210 = vmul.f32 %v164, %v204
        %v211 = vmul.f32 %v169, %v200
        %v212 = vmul.f32 %v169, %v204
        %v213 = vmul.f32 %v174, %v200
        %v214 = vmul.f32 %v174, %v204
        %v215 = vmul.f32 %v179, %v200
        %v216 = vmul.f32 %v179, %v204
        %v217 = vmul.f32 %v184, %v200
        %v218 = vmul.f32 %v184, %v204
        %v219 = vmul.f32 %v189, %v200
        %v220 = vmul.f32 %v189, %v204
        %v221 = vmul.f32 %v194, %v200
        %v222 = vmul.f32 %v194, %v204
        %v224 = vlaneseq
        %v225 = vshrl.u32 %v224, 7
        %v226 = vsub.s32 0, %v225
        %v227 = vrot.slane %v155, %v226
        %v228 = vlaneseq
        %v229 = vshrl.u32 %v228, 7
        %v230 = vsub.s32 1, %v229
        %v231 = vrot.slane %v155, %v230
        %v234 = vadd.f32 %v207, %v227
        %v235 = vadd.f32 %v208, %v231
        %v236 = vadd.f32 %v209, %v227
        %v237 = vadd.f32 %v210, %v231
        %v238 = vadd.f32 %v211, %v227
        %v239 = vadd.f32 %v212, %v231
        %v240 = vadd.f32 %v213, %v227
        %v241 = vadd.f32 %v214, %v231
        %v242 = vadd.f32 %v215, %v227
        %v243 = vadd.f32 %v216, %v231
        %v244 = vadd.f32 %v217, %v227
        %v245 = vadd.f32 %v218, %v231
        %v246 = vadd.f32 %v219, %v227
        %v247 = vadd.f32 %v220, %v231
        %v248 = vadd.f32 %v221, %v227
        %v249 = vadd.f32 %v222, %v231
        %v250 = vand.u32 2147483647, %v234
        %vm251 = vcmp.le.f32.partialorder %v250, 0.7853982
        %vm252 = vcmp.lt.s32.totalorder %v234, 0
        %v253 = vand.u32 %v234, 2139095040
        %v254 = vshrl.u32 %v253, 23
        %v255 = vsub.s32 %v254, 127
        %v256 = vand.u32 2147483647, %v234
        %v257 = vand.u32 %v256, 8388607
        %v258 = vor.u32 %v257, 8388608
        %v259 = vsub.s32 0, %v258
        %v260 = vadd.s32 %v255, 1
        %vm261 = vcmp.gt.s32.totalorder %v260, 0
        %v262 = vsel %vm261, %v260, 0
        %v263 = vshrl.u32 %v262, 5
        %v264 = vand.u32 %v262, 31
        %v265 = vsub.s32 32, %v264
        %v266 = vshrl.u32 683565275, %v265
        %v267 = vshll.u32 683565275, %v264
        %v268 = vshrl.u32 2475754826, %v265
        %v269 = vor.u32 %v267, %v268
        %v270 = vshll.u32 2475754826, %v264
        %v271 = vshrl.u32 2131351028, %v265
        %v272 = vor.u32 %v270, %v271
        %v273 = vshll.u32 2131351028, %v264
        %v274 = vshrl.u32 2102212464, %v265
        %v275 = vor.u32 %v273, %v274
        %v276 = vshll.u32 2102212464, %v264
        %v277 = vshrl.u32 920167782, %v265
        %v278 = vor.u32 %v276, %v277
        %v279 = vshll.u32 920167782, %v264
        %v280 = vshrl.u32 1326507024, %v265
        %v281 = vor.u32 %v279, %v280
        %vm282 = vcmp.lt.s32.totalorder %v263, 1
        %vm283 = vcmp.lt.s32.totalorder %v263, 2
        %vm284 = vcmp.lt.s32.totalorder %v263, 3
        %vm285 = vcmp.lt.s32.totalorder %v263, 4
        %v286 = vsel %vm282, %v266, %v269
        %v287 = vsel %vm285, %v275, 2102212464
        %v288 = vsel %vm284, %v272, %v287
        %v289 = vsel %vm283, %v286, %v288
        %v290 = vsel %vm282, %v269, %v272
        %v291 = vsel %vm285, %v278, 920167782
        %v292 = vsel %vm284, %v275, %v291
        %v293 = vsel %vm283, %v290, %v292
        %v294 = vsel %vm282, %v272, %v275
        %v295 = vsel %vm285, %v281, 1326507024
        %v296 = vsel %vm284, %v278, %v295
        %v297 = vsel %vm283, %v294, %v296
        %v298 = vshll.u32 %v258, 8
        %v299 = vmul.u32.u64.compose %v298, %v297
        %v300 = vextract.low.u32 %v299
        %v301 = vextract.high.u32 %v299
        %v302 = vmul.u32.u64.compose %v298, %v293
        %v303 = vextract.low.u32 %v302
        %v304 = vextract.high.u32 %v302
        %v305 = vmul.u32 %v298, %v289
        %v306 = vadd.s32 %v301, %v303
        %vm307 = vc.u32 %v301, %v303
        %v308 = vadd.s32 %v304, 1
        %v309 = vsel %vm307, %v308, %v304
        %v310 = vadd.s32 %v305, %v309
        %v311 = vadd.s32 %v310, 536870912
        %v312 = vshrl.u32 %v311, 30
        %v313 = vshll.u32 %v312, 30
        %v314 = vsub.s32 %v310, %v313
        %vm315 = vcmp.lt.s32.totalorder %v314, 0
        %v316 = vsub.s32 0, %v314
        %v317 = vsel %vm315, %v316, %v314
        %v318 = vclz %v317
        %v319 = vsub.s32 %v318, 2
        %vm320 = vcmp.gt.s32.totalorder 0, %v319
        %v321 = vsel %vm320, 0, %v319
        %v322 = vsub.s32 32, %v321
        %v323 = vshll.u32 %v314, %v321
        %v324 = vshrl.u32 %v306, %v322
        %v325 = vor.u32 %v323, %v324
        %v326 = vsub.s32 4294967266, %v321
        %v327 = vadd.s32 %v326, 127
        %v328 = vshll.u32 %v327, 23
        %v329 = vor.u32 4788187, %v328
        %v330 = vand.u32 2147483647, %v329
        %v332 = vcvt.s32.f32 %v325
        %v333 = vmul.f32 %v332, %v330
        %v334 = vxor.u32 %v333, 2147483648
        %v335 = vsel %vm252, %v334, %v333
        %v336 = vsub.s32 4, %v312
        %v337 = vsel %vm252, %v336, %v312
        %v338 = vsel %vm251, %v234, %v335
        %v339 = vsel %vm251, 0, %v337
        %v340 = vcosq.f32.pop %v338
        %v341 = vsinq.f32.pop %v338
        %vm342 = vweird.f32 %v234
        %v343 = vand.u32 %v339, 3
        %vm344 = vcmp.lt.s32.totalorder %v343, 2
        %vm345 = vcmp.eq.s32.totalorder %v343, 0
        %v346 = vxor.u32 %v341, 2147483648
        %v347 = vsel %vm345, %v340, %v346
        %vm348 = vcmp.eq.s32.totalorder %v343, 2
        %v349 = vxor.u32 %v340, 2147483648
        %v350 = vsel %vm348, %v349, %v341
        %v351 = vsel %vm344, %v347, %v350
        %v352 = vsel %vm342, nan, %v351
        %v353 = vand.u32 2147483647, %v235
        %vm354 = vcmp.le.f32.partialorder %v353, 0.7853982
        %vm355 = vcmp.lt.s32.totalorder %v235, 0
        %v356 = vand.u32 %v235, 2139095040
        %v357 = vshrl.u32 %v356, 23
        %v358 = vsub.s32 %v357, 127
        %v359 = vand.u32 2147483647, %v235
        %v360 = vand.u32 %v359, 8388607
        %v361 = vor.u32 %v360, 8388608
        %v362 = vsub.s32 0, %v361
        %v363 = vadd.s32 %v358, 1
        %vm364 = vcmp.gt.s32.totalorder %v363, 0
        %v365 = vsel %vm364, %v363, 0
        %v366 = vshrl.u32 %v365, 5
        %v367 = vand.u32 %v365, 31
        %v368 = vsub.s32 32, %v367
        %v369 = vshrl.u32 683565275, %v368
        %v370 = vshll.u32 683565275, %v367
        %v371 = vshrl.u32 2475754826, %v368
        %v372 = vor.u32 %v370, %v371
        %v373 = vshll.u32 2475754826, %v367
        %v374 = vshrl.u32 2131351028, %v368
        %v375 = vor.u32 %v373, %v374
        %v376 = vshll.u32 2131351028, %v367
        %v377 = vshrl.u32 2102212464, %v368
        %v378 = vor.u32 %v376, %v377
        %v379 = vshll.u32 2102212464, %v367
        %v380 = vshrl.u32 920167782, %v368
        %v381 = vor.u32 %v379, %v380
        %v382 = vshll.u32 920167782, %v367
        %v383 = vshrl.u32 1326507024, %v368
        %v384 = vor.u32 %v382, %v383
        %vm385 = vcmp.lt.s32.totalorder %v366, 1
        %vm386 = vcmp.lt.s32.totalorder %v366, 2
        %vm387 = vcmp.lt.s32.totalorder %v366, 3
        %vm388 = vcmp.lt.s32.totalorder %v366, 4
        %v389 = vsel %vm385, %v369, %v372
        %v390 = vsel %vm388, %v378, 2102212464
        %v391 = vsel %vm387, %v375, %v390
        %v392 = vsel %vm386, %v389, %v391
        %v393 = vsel %vm385, %v372, %v375
        %v394 = vsel %vm388, %v381, 920167782
        %v395 = vsel %vm387, %v378, %v394
        %v396 = vsel %vm386, %v393, %v395
        %v397 = vsel %vm385, %v375, %v378
        %v398 = vsel %vm388, %v384, 1326507024
        %v399 = vsel %vm387, %v381, %v398
        %v400 = vsel %vm386, %v397, %v399
        %v401 = vshll.u32 %v361, 8
        %v402 = vmul.u32.u64.compose %v401, %v400
        %v403 = vextract.low.u32 %v402
        %v404 = vextract.high.u32 %v402
        %v405 = vmul.u32.u64.compose %v401, %v396
        %v406 = vextract.low.u32 %v405
        %v407 = vextract.high.u32 %v405
        %v408 = vmul.u32 %v401, %v392
        %v409 = vadd.s32 %v404, %v406
        %vm410 = vc.u32 %v404, %v406
        %v411 = vadd.s32 %v407, 1
        %v412 = vsel %vm410, %v411, %v407
        %v413 = vadd.s32 %v408, %v412
        %v414 = vadd.s32 %v413, 536870912
        %v415 = vshrl.u32 %v414, 30
        %v416 = vshll.u32 %v415, 30
        %v417 = vsub.s32 %v413, %v416
        %vm418 = vcmp.lt.s32.totalorder %v417, 0
        %v419 = vsub.s32 0, %v417
        %v420 = vsel %vm418, %v419, %v417
        %v421 = vclz %v420
        %v422 = vsub.s32 %v421, 2
        %vm423 = vcmp.gt.s32.totalorder 0, %v422
        %v424 = vsel %vm423, 0, %v422
        %v425 = vsub.s32 32, %v424
        %v426 = vshll.u32 %v417, %v424
        %v427 = vshrl.u32 %v409, %v425
        %v428 = vor.u32 %v426, %v427
        %v429 = vsub.s32 4294967266, %v424
        %v430 = vadd.s32 %v429, 127
        %v431 = vshll.u32 %v430, 23
        %v432 = vor.u32 4788187, %v431
        %v433 = vand.u32 2147483647, %v432
        %v435 = vcvt.s32.f32 %v428
        %v436 = vmul.f32 %v435, %v433
        %v437 = vxor.u32 %v436, 2147483648
        %v438 = vsel %vm355, %v437, %v436
        %v439 = vsub.s32 4, %v415
        %v440 = vsel %vm355, %v439, %v415
        %v441 = vsel %vm354, %v235, %v438
        %v442 = vsel %vm354, 0, %v440
        %v443 = vcosq.f32.pop %v441
        %v444 = vsinq.f32.pop %v441
        %vm445 = vweird.f32 %v235
        %v446 = vand.u32 %v442, 3
        %vm447 = vcmp.lt.s32.totalorder %v446, 2
        %vm448 = vcmp.eq.s32.totalorder %v446, 0
        %v449 = vxor.u32 %v444, 2147483648
        %v450 = vsel %vm448, %v443, %v449
        %vm451 = vcmp.eq.s32.totalorder %v446, 2
        %v452 = vxor.u32 %v443, 2147483648
        %v453 = vsel %vm451, %v452, %v444
        %v454 = vsel %vm447, %v450, %v453
        %v455 = vsel %vm445, nan, %v454
        %v456 = vand.u32 2147483647, %v236
        %vm457 = vcmp.le.f32.partialorder %v456, 0.7853982
        %vm458 = vcmp.lt.s32.totalorder %v236, 0
        %v459 = vand.u32 %v236, 2139095040
        %v460 = vshrl.u32 %v459, 23
        %v461 = vsub.s32 %v460, 127
        %v462 = vand.u32 2147483647, %v236
        %v463 = vand.u32 %v462, 8388607
        %v464 = vor.u32 %v463, 8388608
        %v465 = vsub.s32 0, %v464
        %v466 = vadd.s32 %v461, 1
        %vm467 = vcmp.gt.s32.totalorder %v466, 0
        %v468 = vsel %vm467, %v466, 0
        %v469 = vshrl.u32 %v468, 5
        %v470 = vand.u32 %v468, 31
        %v471 = vsub.s32 32, %v470
        %v472 = vshrl.u32 683565275, %v471
        %v473 = vshll.u32 683565275, %v470
        %v474 = vshrl.u32 2475754826, %v471
        %v475 = vor.u32 %v473, %v474
        %v476 = vshll.u32 2475754826, %v470
        %v477 = vshrl.u32 2131351028, %v471
        %v478 = vor.u32 %v476, %v477
        %v479 = vshll.u32 2131351028, %v470
        %v480 = vshrl.u32 2102212464, %v471
        %v481 = vor.u32 %v479, %v480
        %v482 = vshll.u32 2102212464, %v470
        %v483 = vshrl.u32 920167782, %v471
        %v484 = vor.u32 %v482, %v483
        %v485 = vshll.u32 920167782, %v470
        %v486 = vshrl.u32 1326507024, %v471
        %v487 = vor.u32 %v485, %v486
        %vm488 = vcmp.lt.s32.totalorder %v469, 1
        %vm489 = vcmp.lt.s32.totalorder %v469, 2
        %vm490 = vcmp.lt.s32.totalorder %v469, 3
        %vm491 = vcmp.lt.s32.totalorder %v469, 4
        %v492 = vsel %vm488, %v472, %v475
        %v493 = vsel %vm491, %v481, 2102212464
        %v494 = vsel %vm490, %v478, %v493
        %v495 = vsel %vm489, %v492, %v494
        %v496 = vsel %vm488, %v475, %v478
        %v497 = vsel %vm491, %v484, 920167782
        %v498 = vsel %vm490, %v481, %v497
        %v499 = vsel %vm489, %v496, %v498
        %v500 = vsel %vm488, %v478, %v481
        %v501 = vsel %vm491, %v487, 1326507024
        %v502 = vsel %vm490, %v484, %v501
        %v503 = vsel %vm489, %v500, %v502
        %v504 = vshll.u32 %v464, 8
        %v505 = vmul.u32.u64.compose %v504, %v503
        %v506 = vextract.low.u32 %v505
        %v507 = vextract.high.u32 %v505
        %v508 = vmul.u32.u64.compose %v504, %v499
        %v509 = vextract.low.u32 %v508
        %v510 = vextract.high.u32 %v508
        %v511 = vmul.u32 %v504, %v495
        %v512 = vadd.s32 %v507, %v509
        %vm513 = vc.u32 %v507, %v509
        %v514 = vadd.s32 %v510, 1
        %v515 = vsel %vm513, %v514, %v510
        %v516 = vadd.s32 %v511, %v515
        %v517 = vadd.s32 %v516, 536870912
        %v518 = vshrl.u32 %v517, 30
        %v519 = vshll.u32 %v518, 30
        %v520 = vsub.s32 %v516, %v519
        %vm521 = vcmp.lt.s32.totalorder %v520, 0
        %v522 = vsub.s32 0, %v520
        %v523 = vsel %vm521, %v522, %v520
        %v524 = vclz %v523
        %v525 = vsub.s32 %v524, 2
        %vm526 = vcmp.gt.s32.totalorder 0, %v525
        %v527 = vsel %vm526, 0, %v525
        %v528 = vsub.s32 32, %v527
        %v529 = vshll.u32 %v520, %v527
        %v530 = vshrl.u32 %v512, %v528
        %v531 = vor.u32 %v529, %v530
        %v532 = vsub.s32 4294967266, %v527
        %v533 = vadd.s32 %v532, 127
        %v534 = vshll.u32 %v533, 23
        %v535 = vor.u32 4788187, %v534
        %v536 = vand.u32 2147483647, %v535
        %v538 = vcvt.s32.f32 %v531
        %v539 = vmul.f32 %v538, %v536
        %v540 = vxor.u32 %v539, 2147483648
        %v541 = vsel %vm458, %v540, %v539
        %v542 = vsub.s32 4, %v518
        %v543 = vsel %vm458, %v542, %v518
        %v544 = vsel %vm457, %v236, %v541
        %v545 = vsel %vm457, 0, %v543
        %v546 = vcosq.f32.pop %v544
        %v547 = vsinq.f32.pop %v544
        %vm548 = vweird.f32 %v236
        %v549 = vand.u32 %v545, 3
        %vm550 = vcmp.lt.s32.totalorder %v549, 2
        %vm551 = vcmp.eq.s32.totalorder %v549, 0
        %v552 = vxor.u32 %v547, 2147483648
        %v553 = vsel %vm551, %v546, %v552
        %vm554 = vcmp.eq.s32.totalorder %v549, 2
        %v555 = vxor.u32 %v546, 2147483648
        %v556 = vsel %vm554, %v555, %v547
        %v557 = vsel %vm550, %v553, %v556
        %v558 = vsel %vm548, nan, %v557
        %v559 = vand.u32 2147483647, %v237
        %vm560 = vcmp.le.f32.partialorder %v559, 0.7853982
        %vm561 = vcmp.lt.s32.totalorder %v237, 0
        %v562 = vand.u32 %v237, 2139095040
        %v563 = vshrl.u32 %v562, 23
        %v564 = vsub.s32 %v563, 127
        %v565 = vand.u32 2147483647, %v237
        %v566 = vand.u32 %v565, 8388607
        %v567 = vor.u32 %v566, 8388608
        %v568 = vsub.s32 0, %v567
        %v569 = vadd.s32 %v564, 1
        %vm570 = vcmp.gt.s32.totalorder %v569, 0
        %v571 = vsel %vm570, %v569, 0
        %v572 = vshrl.u32 %v571, 5
        %v573 = vand.u32 %v571, 31
        %v574 = vsub.s32 32, %v573
        %v575 = vshrl.u32 683565275, %v574
        %v576 = vshll.u32 683565275, %v573
        %v577 = vshrl.u32 2475754826, %v574
        %v578 = vor.u32 %v576, %v577
        %v579 = vshll.u32 2475754826, %v573
        %v580 = vshrl.u32 2131351028, %v574
        %v581 = vor.u32 %v579, %v580
        %v582 = vshll.u32 2131351028, %v573
        %v583 = vshrl.u32 2102212464, %v574
        %v584 = vor.u32 %v582, %v583
        %v585 = vshll.u32 2102212464, %v573
        %v586 = vshrl.u32 920167782, %v574
        %v587 = vor.u32 %v585, %v586
        %v588 = vshll.u32 920167782, %v573
        %v589 = vshrl.u32 1326507024, %v574
        %v590 = vor.u32 %v588, %v589
        %vm591 = vcmp.lt.s32.totalorder %v572, 1
        %vm592 = vcmp.lt.s32.totalorder %v572, 2
        %vm593 = vcmp.lt.s32.totalorder %v572, 3
        %vm594 = vcmp.lt.s32.totalorder %v572, 4
        %v595 = vsel %vm591, %v575, %v578
        %v596 = vsel %vm594, %v584, 2102212464
        %v597 = vsel %vm593, %v581, %v596
        %v598 = vsel %vm592, %v595, %v597
        %v599 = vsel %vm591, %v578, %v581
        %v600 = vsel %vm594, %v587, 920167782
        %v601 = vsel %vm593, %v584, %v600
        %v602 = vsel %vm592, %v599, %v601
        %v603 = vsel %vm591, %v581, %v584
        %v604 = vsel %vm594, %v590, 1326507024
        %v605 = vsel %vm593, %v587, %v604
        %v606 = vsel %vm592, %v603, %v605
        %v607 = vshll.u32 %v567, 8
        %v608 = vmul.u32.u64.compose %v607, %v606
        %v609 = vextract.low.u32 %v608
        %v610 = vextract.high.u32 %v608
        %v611 = vmul.u32.u64.compose %v607, %v602
        %v612 = vextract.low.u32 %v611
        %v613 = vextract.high.u32 %v611
        %v614 = vmul.u32 %v607, %v598
        %v615 = vadd.s32 %v610, %v612
        %vm616 = vc.u32 %v610, %v612
        %v617 = vadd.s32 %v613, 1
        %v618 = vsel %vm616, %v617, %v613
        %v619 = vadd.s32 %v614, %v618
        %v620 = vadd.s32 %v619, 536870912
        %v621 = vshrl.u32 %v620, 30
        %v622 = vshll.u32 %v621, 30
        %v623 = vsub.s32 %v619, %v622
        %vm624 = vcmp.lt.s32.totalorder %v623, 0
        %v625 = vsub.s32 0, %v623
        %v626 = vsel %vm624, %v625, %v623
        %v627 = vclz %v626
        %v628 = vsub.s32 %v627, 2
        %vm629 = vcmp.gt.s32.totalorder 0, %v628
        %v630 = vsel %vm629, 0, %v628
        %v631 = vsub.s32 32, %v630
        %v632 = vshll.u32 %v623, %v630
        %v633 = vshrl.u32 %v615, %v631
        %v634 = vor.u32 %v632, %v633
        %v635 = vsub.s32 4294967266, %v630
        %v636 = vadd.s32 %v635, 127
        %v637 = vshll.u32 %v636, 23
        %v638 = vor.u32 4788187, %v637
        %v639 = vand.u32 2147483647, %v638
        %v641 = vcvt.s32.f32 %v634
        %v642 = vmul.f32 %v641, %v639
        %v643 = vxor.u32 %v642, 2147483648
        %v644 = vsel %vm561, %v643, %v642
        %v645 = vsub.s32 4, %v621
        %v646 = vsel %vm561, %v645, %v621
        %v647 = vsel %vm560, %v237, %v644
        %v648 = vsel %vm560, 0, %v646
        %v649 = vcosq.f32.pop %v647
        %v650 = vsinq.f32.pop %v647
        %vm651 = vweird.f32 %v237
        %v652 = vand.u32 %v648, 3
        %vm653 = vcmp.lt.s32.totalorder %v652, 2
        %vm654 = vcmp.eq.s32.totalorder %v652, 0
        %v655 = vxor.u32 %v650, 2147483648
        %v656 = vsel %vm654, %v649, %v655
        %vm657 = vcmp.eq.s32.totalorder %v652, 2
        %v658 = vxor.u32 %v649, 2147483648
        %v659 = vsel %vm657, %v658, %v650
        %v660 = vsel %vm653, %v656, %v659
        %v661 = vsel %vm651, nan, %v660
        %v662 = vand.u32 2147483647, %v238
        %vm663 = vcmp.le.f32.partialorder %v662, 0.7853982
        %vm664 = vcmp.lt.s32.totalorder %v238, 0
        %v665 = vand.u32 %v238, 2139095040
        %v666 = vshrl.u32 %v665, 23
        %v667 = vsub.s32 %v666, 127
        %v668 = vand.u32 2147483647, %v238
        %v669 = vand.u32 %v668, 8388607
        %v670 = vor.u32 %v669, 8388608
        %v671 = vsub.s32 0, %v670
        %v672 = vadd.s32 %v667, 1
        %vm673 = vcmp.gt.s32.totalorder %v672, 0
        %v674 = vsel %vm673, %v672, 0
        %v675 = vshrl.u32 %v674, 5
        %v676 = vand.u32 %v674, 31
        %v677 = vsub.s32 32, %v676
        %v678 = vshrl.u32 683565275, %v677
        %v679 = vshll.u32 683565275, %v676
        %v680 = vshrl.u32 2475754826, %v677
        %v681 = vor.u32 %v679, %v680
        %v682 = vshll.u32 2475754826, %v676
        %v683 = vshrl.u32 2131351028, %v677
        %v684 = vor.u32 %v682, %v683
        %v685 = vshll.u32 2131351028, %v676
        %v686 = vshrl.u32 2102212464, %v677
        %v687 = vor.u32 %v685, %v686
        %v688 = vshll.u32 2102212464, %v676
        %v689 = vshrl.u32 920167782, %v677
        %v690 = vor.u32 %v688, %v689
        %v691 = vshll.u32 920167782, %v676
        %v692 = vshrl.u32 1326507024, %v677
        %v693 = vor.u32 %v691, %v692
        %vm694 = vcmp.lt.s32.totalorder %v675, 1
        %vm695 = vcmp.lt.s32.totalorder %v675, 2
        %vm696 = vcmp.lt.s32.totalorder %v675, 3
        %vm697 = vcmp.lt.s32.totalorder %v675, 4
        %v698 = vsel %vm694, %v678, %v681
        %v699 = vsel %vm697, %v687, 2102212464
        %v700 = vsel %vm696, %v684, %v699
        %v701 = vsel %vm695, %v698, %v700
        %v702 = vsel %vm694, %v681, %v684
        %v703 = vsel %vm697, %v690, 920167782
        %v704 = vsel %vm696, %v687, %v703
        %v705 = vsel %vm695, %v702, %v704
        %v706 = vsel %vm694, %v684, %v687
        %v707 = vsel %vm697, %v693, 1326507024
        %v708 = vsel %vm696, %v690, %v707
        %v709 = vsel %vm695, %v706, %v708
        %v710 = vshll.u32 %v670, 8
        %v711 = vmul.u32.u64.compose %v710, %v709
        %v712 = vextract.low.u32 %v711
        %v713 = vextract.high.u32 %v711
        %v714 = vmul.u32.u64.compose %v710, %v705
        %v715 = vextract.low.u32 %v714
        %v716 = vextract.high.u32 %v714
        %v717 = vmul.u32 %v710, %v701
        %v718 = vadd.s32 %v713, %v715
        %vm719 = vc.u32 %v713, %v715
        %v720 = vadd.s32 %v716, 1
        %v721 = vsel %vm719, %v720, %v716
        %v722 = vadd.s32 %v717, %v721
        %v723 = vadd.s32 %v722, 536870912
        %v724 = vshrl.u32 %v723, 30
        %v725 = vshll.u32 %v724, 30
        %v726 = vsub.s32 %v722, %v725
        %vm727 = vcmp.lt.s32.totalorder %v726, 0
        %v728 = vsub.s32 0, %v726
        %v729 = vsel %vm727, %v728, %v726
        %v730 = vclz %v729
        %v731 = vsub.s32 %v730, 2
        %vm732 = vcmp.gt.s32.totalorder 0, %v731
        %v733 = vsel %vm732, 0, %v731
        %v734 = vsub.s32 32, %v733
        %v735 = vshll.u32 %v726, %v733
        %v736 = vshrl.u32 %v718, %v734
        %v737 = vor.u32 %v735, %v736
        %v738 = vsub.s32 4294967266, %v733
        %v739 = vadd.s32 %v738, 127
        %v740 = vshll.u32 %v739, 23
        %v741 = vor.u32 4788187, %v740
        %v742 = vand.u32 2147483647, %v741
        %v744 = vcvt.s32.f32 %v737
        %v745 = vmul.f32 %v744, %v742
        %v746 = vxor.u32 %v745, 2147483648
        %v747 = vsel %vm664, %v746, %v745
        %v748 = vsub.s32 4, %v724
        %v749 = vsel %vm664, %v748, %v724
        %v750 = vsel %vm663, %v238, %v747
        %v751 = vsel %vm663, 0, %v749
        %v752 = vcosq.f32.pop %v750
        %v753 = vsinq.f32.pop %v750
        %vm754 = vweird.f32 %v238
        %v755 = vand.u32 %v751, 3
        %vm756 = vcmp.lt.s32.totalorder %v755, 2
        %vm757 = vcmp.eq.s32.totalorder %v755, 0
        %v758 = vxor.u32 %v753, 2147483648
        %v759 = vsel %vm757, %v752, %v758
        %vm760 = vcmp.eq.s32.totalorder %v755, 2
        %v761 = vxor.u32 %v752, 2147483648
        %v762 = vsel %vm760, %v761, %v753
        %v763 = vsel %vm756, %v759, %v762
        %v764 = vsel %vm754, nan, %v763
        %v765 = vand.u32 2147483647, %v239
        %vm766 = vcmp.le.f32.partialorder %v765, 0.7853982
        %vm767 = vcmp.lt.s32.totalorder %v239, 0
        %v768 = vand.u32 %v239, 2139095040
        %v769 = vshrl.u32 %v768, 23
        %v770 = vsub.s32 %v769, 127
        %v771 = vand.u32 2147483647, %v239
        %v772 = vand.u32 %v771, 8388607
        %v773 = vor.u32 %v772, 8388608
        %v774 = vsub.s32 0, %v773
        %v775 = vadd.s32 %v770, 1
        %vm776 = vcmp.gt.s32.totalorder %v775, 0
        %v777 = vsel %vm776, %v775, 0
        %v778 = vshrl.u32 %v777, 5
        %v779 = vand.u32 %v777, 31
        %v780 = vsub.s32 32, %v779
        %v781 = vshrl.u32 683565275, %v780
        %v782 = vshll.u32 683565275, %v779
        %v783 = vshrl.u32 2475754826, %v780
        %v784 = vor.u32 %v782, %v783
        %v785 = vshll.u32 2475754826, %v779
        %v786 = vshrl.u32 2131351028, %v780
        %v787 = vor.u32 %v785, %v786
        %v788 = vshll.u32 2131351028, %v779
        %v789 = vshrl.u32 2102212464, %v780
        %v790 = vor.u32 %v788, %v789
        %v791 = vshll.u32 2102212464, %v779
        %v792 = vshrl.u32 920167782, %v780
        %v793 = vor.u32 %v791, %v792
        %v794 = vshll.u32 920167782, %v779
        %v795 = vshrl.u32 1326507024, %v780
        %v796 = vor.u32 %v794, %v795
        %vm797 = vcmp.lt.s32.totalorder %v778, 1
        %vm798 = vcmp.lt.s32.totalorder %v778, 2
        %vm799 = vcmp.lt.s32.totalorder %v778, 3
        %vm800 = vcmp.lt.s32.totalorder %v778, 4
        %v801 = vsel %vm797, %v781, %v784
        %v802 = vsel %vm800, %v790, 2102212464
        %v803 = vsel %vm799, %v787, %v802
        %v804 = vsel %vm798, %v801, %v803
        %v805 = vsel %vm797, %v784, %v787
        %v806 = vsel %vm800, %v793, 920167782
        %v807 = vsel %vm799, %v790, %v806
        %v808 = vsel %vm798, %v805, %v807
        %v809 = vsel %vm797, %v787, %v790
        %v810 = vsel %vm800, %v796, 1326507024
        %v811 = vsel %vm799, %v793, %v810
        %v812 = vsel %vm798, %v809, %v811
        %v813 = vshll.u32 %v773, 8
        %v814 = vmul.u32.u64.compose %v813, %v812
        %v815 = vextract.low.u32 %v814
        %v816 = vextract.high.u32 %v814
        %v817 = vmul.u32.u64.compose %v813, %v808
        %v818 = vextract.low.u32 %v817
        %v819 = vextract.high.u32 %v817
        %v820 = vmul.u32 %v813, %v804
        %v821 = vadd.s32 %v816, %v818
        %vm822 = vc.u32 %v816, %v818
        %v823 = vadd.s32 %v819, 1
        %v824 = vsel %vm822, %v823, %v819
        %v825 = vadd.s32 %v820, %v824
        %v826 = vadd.s32 %v825, 536870912
        %v827 = vshrl.u32 %v826, 30
        %v828 = vshll.u32 %v827, 30
        %v829 = vsub.s32 %v825, %v828
        %vm830 = vcmp.lt.s32.totalorder %v829, 0
        %v831 = vsub.s32 0, %v829
        %v832 = vsel %vm830, %v831, %v829
        %v833 = vclz %v832
        %v834 = vsub.s32 %v833, 2
        %vm835 = vcmp.gt.s32.totalorder 0, %v834
        %v836 = vsel %vm835, 0, %v834
        %v837 = vsub.s32 32, %v836
        %v838 = vshll.u32 %v829, %v836
        %v839 = vshrl.u32 %v821, %v837
        %v840 = vor.u32 %v838, %v839
        %v841 = vsub.s32 4294967266, %v836
        %v842 = vadd.s32 %v841, 127
        %v843 = vshll.u32 %v842, 23
        %v844 = vor.u32 4788187, %v843
        %v845 = vand.u32 2147483647, %v844
        %v847 = vcvt.s32.f32 %v840
        %v848 = vmul.f32 %v847, %v845
        %v849 = vxor.u32 %v848, 2147483648
        %v850 = vsel %vm767, %v849, %v848
        %v851 = vsub.s32 4, %v827
        %v852 = vsel %vm767, %v851, %v827
        %v853 = vsel %vm766, %v239, %v850
        %v854 = vsel %vm766, 0, %v852
        %v855 = vcosq.f32.pop %v853
        %v856 = vsinq.f32.pop %v853
        %vm857 = vweird.f32 %v239
        %v858 = vand.u32 %v854, 3
        %vm859 = vcmp.lt.s32.totalorder %v858, 2
        %vm860 = vcmp.eq.s32.totalorder %v858, 0
        %v861 = vxor.u32 %v856, 2147483648
        %v862 = vsel %vm860, %v855, %v861
        %vm863 = vcmp.eq.s32.totalorder %v858, 2
        %v864 = vxor.u32 %v855, 2147483648
        %v865 = vsel %vm863, %v864, %v856
        %v866 = vsel %vm859, %v862, %v865
        %v867 = vsel %vm857, nan, %v866
        %v868 = vand.u32 2147483647, %v240
        %vm869 = vcmp.le.f32.partialorder %v868, 0.7853982
        %vm870 = vcmp.lt.s32.totalorder %v240, 0
        %v871 = vand.u32 %v240, 2139095040
        %v872 = vshrl.u32 %v871, 23
        %v873 = vsub.s32 %v872, 127
        %v874 = vand.u32 2147483647, %v240
        %v875 = vand.u32 %v874, 8388607
        %v876 = vor.u32 %v875, 8388608
        %v877 = vsub.s32 0, %v876
        %v878 = vadd.s32 %v873, 1
        %vm879 = vcmp.gt.s32.totalorder %v878, 0
        %v880 = vsel %vm879, %v878, 0
        %v881 = vshrl.u32 %v880, 5
        %v882 = vand.u32 %v880, 31
        %v883 = vsub.s32 32, %v882
        %v884 = vshrl.u32 683565275, %v883
        %v885 = vshll.u32 683565275, %v882
        %v886 = vshrl.u32 2475754826, %v883
        %v887 = vor.u32 %v885, %v886
        %v888 = vshll.u32 2475754826, %v882
        %v889 = vshrl.u32 2131351028, %v883
        %v890 = vor.u32 %v888, %v889
        %v891 = vshll.u32 2131351028, %v882
        %v892 = vshrl.u32 2102212464, %v883
        %v893 = vor.u32 %v891, %v892
        %v894 = vshll.u32 2102212464, %v882
        %v895 = vshrl.u32 920167782, %v883
        %v896 = vor.u32 %v894, %v895
        %v897 = vshll.u32 920167782, %v882
        %v898 = vshrl.u32 1326507024, %v883
        %v899 = vor.u32 %v897, %v898
        %vm900 = vcmp.lt.s32.totalorder %v881, 1
        %vm901 = vcmp.lt.s32.totalorder %v881, 2
        %vm902 = vcmp.lt.s32.totalorder %v881, 3
        %vm903 = vcmp.lt.s32.totalorder %v881, 4
        %v904 = vsel %vm900, %v884, %v887
        %v905 = vsel %vm903, %v893, 2102212464
        %v906 = vsel %vm902, %v890, %v905
        %v907 = vsel %vm901, %v904, %v906
        %v908 = vsel %vm900, %v887, %v890
        %v909 = vsel %vm903, %v896, 920167782
        %v910 = vsel %vm902, %v893, %v909
        %v911 = vsel %vm901, %v908, %v910
        %v912 = vsel %vm900, %v890, %v893
        %v913 = vsel %vm903, %v899, 1326507024
        %v914 = vsel %vm902, %v896, %v913
        %v915 = vsel %vm901, %v912, %v914
        %v916 = vshll.u32 %v876, 8
        %v917 = vmul.u32.u64.compose %v916, %v915
        %v918 = vextract.low.u32 %v917
        %v919 = vextract.high.u32 %v917
        %v920 = vmul.u32.u64.compose %v916, %v911
        %v921 = vextract.low.u32 %v920
        %v922 = vextract.high.u32 %v920
        %v923 = vmul.u32 %v916, %v907
        %v924 = vadd.s32 %v919, %v921
        %vm925 = vc.u32 %v919, %v921
        %v926 = vadd.s32 %v922, 1
        %v927 = vsel %vm925, %v926, %v922
        %v928 = vadd.s32 %v923, %v927
        %v929 = vadd.s32 %v928, 536870912
        %v930 = vshrl.u32 %v929, 30
        %v931 = vshll.u32 %v930, 30
        %v932 = vsub.s32 %v928, %v931
        %vm933 = vcmp.lt.s32.totalorder %v932, 0
        %v934 = vsub.s32 0, %v932
        %v935 = vsel %vm933, %v934, %v932
        %v936 = vclz %v935
        %v937 = vsub.s32 %v936, 2
        %vm938 = vcmp.gt.s32.totalorder 0, %v937
        %v939 = vsel %vm938, 0, %v937
        %v940 = vsub.s32 32, %v939
        %v941 = vshll.u32 %v932, %v939
        %v942 = vshrl.u32 %v924, %v940
        %v943 = vor.u32 %v941, %v942
        %v944 = vsub.s32 4294967266, %v939
        %v945 = vadd.s32 %v944, 127
        %v946 = vshll.u32 %v945, 23
        %v947 = vor.u32 4788187, %v946
        %v948 = vand.u32 2147483647, %v947
        %v950 = vcvt.s32.f32 %v943
        %v951 = vmul.f32 %v950, %v948
        %v952 = vxor.u32 %v951, 2147483648
        %v953 = vsel %vm870, %v952, %v951
        %v954 = vsub.s32 4, %v930
        %v955 = vsel %vm870, %v954, %v930
        %v956 = vsel %vm869, %v240, %v953
        %v957 = vsel %vm869, 0, %v955
        %v958 = vcosq.f32.pop %v956
        %v959 = vsinq.f32.pop %v956
        %vm960 = vweird.f32 %v240
        %v961 = vand.u32 %v957, 3
        %vm962 = vcmp.lt.s32.totalorder %v961, 2
        %vm963 = vcmp.eq.s32.totalorder %v961, 0
        %v964 = vxor.u32 %v959, 2147483648
        %v965 = vsel %vm963, %v958, %v964
        %vm966 = vcmp.eq.s32.totalorder %v961, 2
        %v967 = vxor.u32 %v958, 2147483648
        %v968 = vsel %vm966, %v967, %v959
        %v969 = vsel %vm962, %v965, %v968
        %v970 = vsel %vm960, nan, %v969
        %v971 = vand.u32 2147483647, %v241
        %vm972 = vcmp.le.f32.partialorder %v971, 0.7853982
        %vm973 = vcmp.lt.s32.totalorder %v241, 0
        %v974 = vand.u32 %v241, 2139095040
        %v975 = vshrl.u32 %v974, 23
        %v976 = vsub.s32 %v975, 127
        %v977 = vand.u32 2147483647, %v241
        %v978 = vand.u32 %v977, 8388607
        %v979 = vor.u32 %v978, 8388608
        %v980 = vsub.s32 0, %v979
        %v981 = vadd.s32 %v976, 1
        %vm982 = vcmp.gt.s32.totalorder %v981, 0
        %v983 = vsel %vm982, %v981, 0
        %v984 = vshrl.u32 %v983, 5
        %v985 = vand.u32 %v983, 31
        %v986 = vsub.s32 32, %v985
        %v987 = vshrl.u32 683565275, %v986
        %v988 = vshll.u32 683565275, %v985
        %v989 = vshrl.u32 2475754826, %v986
        %v990 = vor.u32 %v988, %v989
        %v991 = vshll.u32 2475754826, %v985
        %v992 = vshrl.u32 2131351028, %v986
        %v993 = vor.u32 %v991, %v992
        %v994 = vshll.u32 2131351028, %v985
        %v995 = vshrl.u32 2102212464, %v986
        %v996 = vor.u32 %v994, %v995
        %v997 = vshll.u32 2102212464, %v985
        %v998 = vshrl.u32 920167782, %v986
        %v999 = vor.u32 %v997, %v998
        %v1000 = vshll.u32 920167782, %v985
        %v1001 = vshrl.u32 1326507024, %v986
        %v1002 = vor.u32 %v1000, %v1001
        %vm1003 = vcmp.lt.s32.totalorder %v984, 1
        %vm1004 = vcmp.lt.s32.totalorder %v984, 2
        %vm1005 = vcmp.lt.s32.totalorder %v984, 3
        %vm1006 = vcmp.lt.s32.totalorder %v984, 4
        %v1007 = vsel %vm1003, %v987, %v990
        %v1008 = vsel %vm1006, %v996, 2102212464
        %v1009 = vsel %vm1005, %v993, %v1008
        %v1010 = vsel %vm1004, %v1007, %v1009
        %v1011 = vsel %vm1003, %v990, %v993
        %v1012 = vsel %vm1006, %v999, 920167782
        %v1013 = vsel %vm1005, %v996, %v1012
        %v1014 = vsel %vm1004, %v1011, %v1013
        %v1015 = vsel %vm1003, %v993, %v996
        %v1016 = vsel %vm1006, %v1002, 1326507024
        %v1017 = vsel %vm1005, %v999, %v1016
        %v1018 = vsel %vm1004, %v1015, %v1017
        %v1019 = vshll.u32 %v979, 8
        %v1020 = vmul.u32.u64.compose %v1019, %v1018
        %v1021 = vextract.low.u32 %v1020
        %v1022 = vextract.high.u32 %v1020
        %v1023 = vmul.u32.u64.compose %v1019, %v1014
        %v1024 = vextract.low.u32 %v1023
        %v1025 = vextract.high.u32 %v1023
        %v1026 = vmul.u32 %v1019, %v1010
        %v1027 = vadd.s32 %v1022, %v1024
        %vm1028 = vc.u32 %v1022, %v1024
        %v1029 = vadd.s32 %v1025, 1
        %v1030 = vsel %vm1028, %v1029, %v1025
        %v1031 = vadd.s32 %v1026, %v1030
        %v1032 = vadd.s32 %v1031, 536870912
        %v1033 = vshrl.u32 %v1032, 30
        %v1034 = vshll.u32 %v1033, 30
        %v1035 = vsub.s32 %v1031, %v1034
        %vm1036 = vcmp.lt.s32.totalorder %v1035, 0
        %v1037 = vsub.s32 0, %v1035
        %v1038 = vsel %vm1036, %v1037, %v1035
        %v1039 = vclz %v1038
        %v1040 = vsub.s32 %v1039, 2
        %vm1041 = vcmp.gt.s32.totalorder 0, %v1040
        %v1042 = vsel %vm1041, 0, %v1040
        %v1043 = vsub.s32 32, %v1042
        %v1044 = vshll.u32 %v1035, %v1042
        %v1045 = vshrl.u32 %v1027, %v1043
        %v1046 = vor.u32 %v1044, %v1045
        %v1047 = vsub.s32 4294967266, %v1042
        %v1048 = vadd.s32 %v1047, 127
        %v1049 = vshll.u32 %v1048, 23
        %v1050 = vor.u32 4788187, %v1049
        %v1051 = vand.u32 2147483647, %v1050
        %v1053 = vcvt.s32.f32 %v1046
        %v1054 = vmul.f32 %v1053, %v1051
        %v1055 = vxor.u32 %v1054, 2147483648
        %v1056 = vsel %vm973, %v1055, %v1054
        %v1057 = vsub.s32 4, %v1033
        %v1058 = vsel %vm973, %v1057, %v1033
        %v1059 = vsel %vm972, %v241, %v1056
        %v1060 = vsel %vm972, 0, %v1058
        %v1061 = vcosq.f32.pop %v1059
        %v1062 = vsinq.f32.pop %v1059
        %vm1063 = vweird.f32 %v241
        %v1064 = vand.u32 %v1060, 3
        %vm1065 = vcmp.lt.s32.totalorder %v1064, 2
        %vm1066 = vcmp.eq.s32.totalorder %v1064, 0
        %v1067 = vxor.u32 %v1062, 2147483648
        %v1068 = vsel %vm1066, %v1061, %v1067
        %vm1069 = vcmp.eq.s32.totalorder %v1064, 2
        %v1070 = vxor.u32 %v1061, 2147483648
        %v1071 = vsel %vm1069, %v1070, %v1062
        %v1072 = vsel %vm1065, %v1068, %v1071
        %v1073 = vsel %vm1063, nan, %v1072
        %v1074 = vand.u32 2147483647, %v242
        %vm1075 = vcmp.le.f32.partialorder %v1074, 0.7853982
        %vm1076 = vcmp.lt.s32.totalorder %v242, 0
        %v1077 = vand.u32 %v242, 2139095040
        %v1078 = vshrl.u32 %v1077, 23
        %v1079 = vsub.s32 %v1078, 127
        %v1080 = vand.u32 2147483647, %v242
        %v1081 = vand.u32 %v1080, 8388607
        %v1082 = vor.u32 %v1081, 8388608
        %v1083 = vsub.s32 0, %v1082
        %v1084 = vadd.s32 %v1079, 1
        %vm1085 = vcmp.gt.s32.totalorder %v1084, 0
        %v1086 = vsel %vm1085, %v1084, 0
        %v1087 = vshrl.u32 %v1086, 5
        %v1088 = vand.u32 %v1086, 31
        %v1089 = vsub.s32 32, %v1088
        %v1090 = vshrl.u32 683565275, %v1089
        %v1091 = vshll.u32 683565275, %v1088
        %v1092 = vshrl.u32 2475754826, %v1089
        %v1093 = vor.u32 %v1091, %v1092
        %v1094 = vshll.u32 2475754826, %v1088
        %v1095 = vshrl.u32 2131351028, %v1089
        %v1096 = vor.u32 %v1094, %v1095
        %v1097 = vshll.u32 2131351028, %v1088
        %v1098 = vshrl.u32 2102212464, %v1089
        %v1099 = vor.u32 %v1097, %v1098
        %v1100 = vshll.u32 2102212464, %v1088
        %v1101 = vshrl.u32 920167782, %v1089
        %v1102 = vor.u32 %v1100, %v1101
        %v1103 = vshll.u32 920167782, %v1088
        %v1104 = vshrl.u32 1326507024, %v1089
        %v1105 = vor.u32 %v1103, %v1104
        %vm1106 = vcmp.lt.s32.totalorder %v1087, 1
        %vm1107 = vcmp.lt.s32.totalorder %v1087, 2
        %vm1108 = vcmp.lt.s32.totalorder %v1087, 3
        %vm1109 = vcmp.lt.s32.totalorder %v1087, 4
        %v1110 = vsel %vm1106, %v1090, %v1093
        %v1111 = vsel %vm1109, %v1099, 2102212464
        %v1112 = vsel %vm1108, %v1096, %v1111
        %v1113 = vsel %vm1107, %v1110, %v1112
        %v1114 = vsel %vm1106, %v1093, %v1096
        %v1115 = vsel %vm1109, %v1102, 920167782
        %v1116 = vsel %vm1108, %v1099, %v1115
        %v1117 = vsel %vm1107, %v1114, %v1116
        %v1118 = vsel %vm1106, %v1096, %v1099
        %v1119 = vsel %vm1109, %v1105, 1326507024
        %v1120 = vsel %vm1108, %v1102, %v1119
        %v1121 = vsel %vm1107, %v1118, %v1120
        %v1122 = vshll.u32 %v1082, 8
        %v1123 = vmul.u32.u64.compose %v1122, %v1121
        %v1124 = vextract.low.u32 %v1123
        %v1125 = vextract.high.u32 %v1123
        %v1126 = vmul.u32.u64.compose %v1122, %v1117
        %v1127 = vextract.low.u32 %v1126
        %v1128 = vextract.high.u32 %v1126
        %v1129 = vmul.u32 %v1122, %v1113
        %v1130 = vadd.s32 %v1125, %v1127
        %vm1131 = vc.u32 %v1125, %v1127
        %v1132 = vadd.s32 %v1128, 1
        %v1133 = vsel %vm1131, %v1132, %v1128
        %v1134 = vadd.s32 %v1129, %v1133
        %v1135 = vadd.s32 %v1134, 536870912
        %v1136 = vshrl.u32 %v1135, 30
        %v1137 = vshll.u32 %v1136, 30
        %v1138 = vsub.s32 %v1134, %v1137
        %vm1139 = vcmp.lt.s32.totalorder %v1138, 0
        %v1140 = vsub.s32 0, %v1138
        %v1141 = vsel %vm1139, %v1140, %v1138
        %v1142 = vclz %v1141
        %v1143 = vsub.s32 %v1142, 2
        %vm1144 = vcmp.gt.s32.totalorder 0, %v1143
        %v1145 = vsel %vm1144, 0, %v1143
        %v1146 = vsub.s32 32, %v1145
        %v1147 = vshll.u32 %v1138, %v1145
        %v1148 = vshrl.u32 %v1130, %v1146
        %v1149 = vor.u32 %v1147, %v1148
        %v1150 = vsub.s32 4294967266, %v1145
        %v1151 = vadd.s32 %v1150, 127
        %v1152 = vshll.u32 %v1151, 23
        %v1153 = vor.u32 4788187, %v1152
        %v1154 = vand.u32 2147483647, %v1153
        %v1156 = vcvt.s32.f32 %v1149
        %v1157 = vmul.f32 %v1156, %v1154
        %v1158 = vxor.u32 %v1157, 2147483648
        %v1159 = vsel %vm1076, %v1158, %v1157
        %v1160 = vsub.s32 4, %v1136
        %v1161 = vsel %vm1076, %v1160, %v1136
        %v1162 = vsel %vm1075, %v242, %v1159
        %v1163 = vsel %vm1075, 0, %v1161
        %v1164 = vcosq.f32.pop %v1162
        %v1165 = vsinq.f32.pop %v1162
        %vm1166 = vweird.f32 %v242
        %v1167 = vand.u32 %v1163, 3
        %vm1168 = vcmp.lt.s32.totalorder %v1167, 2
        %vm1169 = vcmp.eq.s32.totalorder %v1167, 0
        %v1170 = vxor.u32 %v1165, 2147483648
        %v1171 = vsel %vm1169, %v1164, %v1170
        %vm1172 = vcmp.eq.s32.totalorder %v1167, 2
        %v1173 = vxor.u32 %v1164, 2147483648
        %v1174 = vsel %vm1172, %v1173, %v1165
        %v1175 = vsel %vm1168, %v1171, %v1174
        %v1176 = vsel %vm1166, nan, %v1175
        %v1177 = vand.u32 2147483647, %v243
        %vm1178 = vcmp.le.f32.partialorder %v1177, 0.7853982
        %vm1179 = vcmp.lt.s32.totalorder %v243, 0
        %v1180 = vand.u32 %v243, 2139095040
        %v1181 = vshrl.u32 %v1180, 23
        %v1182 = vsub.s32 %v1181, 127
        %v1183 = vand.u32 2147483647, %v243
        %v1184 = vand.u32 %v1183, 8388607
        %v1185 = vor.u32 %v1184, 8388608
        %v1186 = vsub.s32 0, %v1185
        %v1187 = vadd.s32 %v1182, 1
        %vm1188 = vcmp.gt.s32.totalorder %v1187, 0
        %v1189 = vsel %vm1188, %v1187, 0
        %v1190 = vshrl.u32 %v1189, 5
        %v1191 = vand.u32 %v1189, 31
        %v1192 = vsub.s32 32, %v1191
        %v1193 = vshrl.u32 683565275, %v1192
        %v1194 = vshll.u32 683565275, %v1191
        %v1195 = vshrl.u32 2475754826, %v1192
        %v1196 = vor.u32 %v1194, %v1195
        %v1197 = vshll.u32 2475754826, %v1191
        %v1198 = vshrl.u32 2131351028, %v1192
        %v1199 = vor.u32 %v1197, %v1198
        %v1200 = vshll.u32 2131351028, %v1191
        %v1201 = vshrl.u32 2102212464, %v1192
        %v1202 = vor.u32 %v1200, %v1201
        %v1203 = vshll.u32 2102212464, %v1191
        %v1204 = vshrl.u32 920167782, %v1192
        %v1205 = vor.u32 %v1203, %v1204
        %v1206 = vshll.u32 920167782, %v1191
        %v1207 = vshrl.u32 1326507024, %v1192
        %v1208 = vor.u32 %v1206, %v1207
        %vm1209 = vcmp.lt.s32.totalorder %v1190, 1
        %vm1210 = vcmp.lt.s32.totalorder %v1190, 2
        %vm1211 = vcmp.lt.s32.totalorder %v1190, 3
        %vm1212 = vcmp.lt.s32.totalorder %v1190, 4
        %v1213 = vsel %vm1209, %v1193, %v1196
        %v1214 = vsel %vm1212, %v1202, 2102212464
        %v1215 = vsel %vm1211, %v1199, %v1214
        %v1216 = vsel %vm1210, %v1213, %v1215
        %v1217 = vsel %vm1209, %v1196, %v1199
        %v1218 = vsel %vm1212, %v1205, 920167782
        %v1219 = vsel %vm1211, %v1202, %v1218
        %v1220 = vsel %vm1210, %v1217, %v1219
        %v1221 = vsel %vm1209, %v1199, %v1202
        %v1222 = vsel %vm1212, %v1208, 1326507024
        %v1223 = vsel %vm1211, %v1205, %v1222
        %v1224 = vsel %vm1210, %v1221, %v1223
        %v1225 = vshll.u32 %v1185, 8
        %v1226 = vmul.u32.u64.compose %v1225, %v1224
        %v1227 = vextract.low.u32 %v1226
        %v1228 = vextract.high.u32 %v1226
        %v1229 = vmul.u32.u64.compose %v1225, %v1220
        %v1230 = vextract.low.u32 %v1229
        %v1231 = vextract.high.u32 %v1229
        %v1232 = vmul.u32 %v1225, %v1216
        %v1233 = vadd.s32 %v1228, %v1230
        %vm1234 = vc.u32 %v1228, %v1230
        %v1235 = vadd.s32 %v1231, 1
        %v1236 = vsel %vm1234, %v1235, %v1231
        %v1237 = vadd.s32 %v1232, %v1236
        %v1238 = vadd.s32 %v1237, 536870912
        %v1239 = vshrl.u32 %v1238, 30
        %v1240 = vshll.u32 %v1239, 30
        %v1241 = vsub.s32 %v1237, %v1240
        %vm1242 = vcmp.lt.s32.totalorder %v1241, 0
        %v1243 = vsub.s32 0, %v1241
        %v1244 = vsel %vm1242, %v1243, %v1241
        %v1245 = vclz %v1244
        %v1246 = vsub.s32 %v1245, 2
        %vm1247 = vcmp.gt.s32.totalorder 0, %v1246
        %v1248 = vsel %vm1247, 0, %v1246
        %v1249 = vsub.s32 32, %v1248
        %v1250 = vshll.u32 %v1241, %v1248
        %v1251 = vshrl.u32 %v1233, %v1249
        %v1252 = vor.u32 %v1250, %v1251
        %v1253 = vsub.s32 4294967266, %v1248
        %v1254 = vadd.s32 %v1253, 127
        %v1255 = vshll.u32 %v1254, 23
        %v1256 = vor.u32 4788187, %v1255
        %v1257 = vand.u32 2147483647, %v1256
        %v1259 = vcvt.s32.f32 %v1252
        %v1260 = vmul.f32 %v1259, %v1257
        %v1261 = vxor.u32 %v1260, 2147483648
        %v1262 = vsel %vm1179, %v1261, %v1260
        %v1263 = vsub.s32 4, %v1239
        %v1264 = vsel %vm1179, %v1263, %v1239
        %v1265 = vsel %vm1178, %v243, %v1262
        %v1266 = vsel %vm1178, 0, %v1264
        %v1267 = vcosq.f32.pop %v1265
        %v1268 = vsinq.f32.pop %v1265
        %vm1269 = vweird.f32 %v243
        %v1270 = vand.u32 %v1266, 3
        %vm1271 = vcmp.lt.s32.totalorder %v1270, 2
        %vm1272 = vcmp.eq.s32.totalorder %v1270, 0
        %v1273 = vxor.u32 %v1268, 2147483648
        %v1274 = vsel %vm1272, %v1267, %v1273
        %vm1275 = vcmp.eq.s32.totalorder %v1270, 2
        %v1276 = vxor.u32 %v1267, 2147483648
        %v1277 = vsel %vm1275, %v1276, %v1268
        %v1278 = vsel %vm1271, %v1274, %v1277
        %v1279 = vsel %vm1269, nan, %v1278
        %v1280 = vand.u32 2147483647, %v244
        %vm1281 = vcmp.le.f32.partialorder %v1280, 0.7853982
        %vm1282 = vcmp.lt.s32.totalorder %v244, 0
        %v1283 = vand.u32 %v244, 2139095040
        %v1284 = vshrl.u32 %v1283, 23
        %v1285 = vsub.s32 %v1284, 127
        %v1286 = vand.u32 2147483647, %v244
        %v1287 = vand.u32 %v1286, 8388607
        %v1288 = vor.u32 %v1287, 8388608
        %v1289 = vsub.s32 0, %v1288
        %v1290 = vadd.s32 %v1285, 1
        %vm1291 = vcmp.gt.s32.totalorder %v1290, 0
        %v1292 = vsel %vm1291, %v1290, 0
        %v1293 = vshrl.u32 %v1292, 5
        %v1294 = vand.u32 %v1292, 31
        %v1295 = vsub.s32 32, %v1294
        %v1296 = vshrl.u32 683565275, %v1295
        %v1297 = vshll.u32 683565275, %v1294
        %v1298 = vshrl.u32 2475754826, %v1295
        %v1299 = vor.u32 %v1297, %v1298
        %v1300 = vshll.u32 2475754826, %v1294
        %v1301 = vshrl.u32 2131351028, %v1295
        %v1302 = vor.u32 %v1300, %v1301
        %v1303 = vshll.u32 2131351028, %v1294
        %v1304 = vshrl.u32 2102212464, %v1295
        %v1305 = vor.u32 %v1303, %v1304
        %v1306 = vshll.u32 2102212464, %v1294
        %v1307 = vshrl.u32 920167782, %v1295
        %v1308 = vor.u32 %v1306, %v1307
        %v1309 = vshll.u32 920167782, %v1294
        %v1310 = vshrl.u32 1326507024, %v1295
        %v1311 = vor.u32 %v1309, %v1310
        %vm1312 = vcmp.lt.s32.totalorder %v1293, 1
        %vm1313 = vcmp.lt.s32.totalorder %v1293, 2
        %vm1314 = vcmp.lt.s32.totalorder %v1293, 3
        %vm1315 = vcmp.lt.s32.totalorder %v1293, 4
        %v1316 = vsel %vm1312, %v1296, %v1299
        %v1317 = vsel %vm1315, %v1305, 2102212464
        %v1318 = vsel %vm1314, %v1302, %v1317
        %v1319 = vsel %vm1313, %v1316, %v1318
        %v1320 = vsel %vm1312, %v1299, %v1302
        %v1321 = vsel %vm1315, %v1308, 920167782
        %v1322 = vsel %vm1314, %v1305, %v1321
        %v1323 = vsel %vm1313, %v1320, %v1322
        %v1324 = vsel %vm1312, %v1302, %v1305
        %v1325 = vsel %vm1315, %v1311, 1326507024
        %v1326 = vsel %vm1314, %v1308, %v1325
        %v1327 = vsel %vm1313, %v1324, %v1326
        %v1328 = vshll.u32 %v1288, 8
        %v1329 = vmul.u32.u64.compose %v1328, %v1327
        %v1330 = vextract.low.u32 %v1329
        %v1331 = vextract.high.u32 %v1329
        %v1332 = vmul.u32.u64.compose %v1328, %v1323
        %v1333 = vextract.low.u32 %v1332
        %v1334 = vextract.high.u32 %v1332
        %v1335 = vmul.u32 %v1328, %v1319
        %v1336 = vadd.s32 %v1331, %v1333
        %vm1337 = vc.u32 %v1331, %v1333
        %v1338 = vadd.s32 %v1334, 1
        %v1339 = vsel %vm1337, %v1338, %v1334
        %v1340 = vadd.s32 %v1335, %v1339
        %v1341 = vadd.s32 %v1340, 536870912
        %v1342 = vshrl.u32 %v1341, 30
        %v1343 = vshll.u32 %v1342, 30
        %v1344 = vsub.s32 %v1340, %v1343
        %vm1345 = vcmp.lt.s32.totalorder %v1344, 0
        %v1346 = vsub.s32 0, %v1344
        %v1347 = vsel %vm1345, %v1346, %v1344
        %v1348 = vclz %v1347
        %v1349 = vsub.s32 %v1348, 2
        %vm1350 = vcmp.gt.s32.totalorder 0, %v1349
        %v1351 = vsel %vm1350, 0, %v1349
        %v1352 = vsub.s32 32, %v1351
        %v1353 = vshll.u32 %v1344, %v1351
        %v1354 = vshrl.u32 %v1336, %v1352
        %v1355 = vor.u32 %v1353, %v1354
        %v1356 = vsub.s32 4294967266, %v1351
        %v1357 = vadd.s32 %v1356, 127
        %v1358 = vshll.u32 %v1357, 23
        %v1359 = vor.u32 4788187, %v1358
        %v1360 = vand.u32 2147483647, %v1359
        %v1362 = vcvt.s32.f32 %v1355
        %v1363 = vmul.f32 %v1362, %v1360
        %v1364 = vxor.u32 %v1363, 2147483648
        %v1365 = vsel %vm1282, %v1364, %v1363
        %v1366 = vsub.s32 4, %v1342
        %v1367 = vsel %vm1282, %v1366, %v1342
        %v1368 = vsel %vm1281, %v244, %v1365
        %v1369 = vsel %vm1281, 0, %v1367
        %v1370 = vcosq.f32.pop %v1368
        %v1371 = vsinq.f32.pop %v1368
        %vm1372 = vweird.f32 %v244
        %v1373 = vand.u32 %v1369, 3
        %vm1374 = vcmp.lt.s32.totalorder %v1373, 2
        %vm1375 = vcmp.eq.s32.totalorder %v1373, 0
        %v1376 = vxor.u32 %v1371, 2147483648
        %v1377 = vsel %vm1375, %v1370, %v1376
        %vm1378 = vcmp.eq.s32.totalorder %v1373, 2
        %v1379 = vxor.u32 %v1370, 2147483648
        %v1380 = vsel %vm1378, %v1379, %v1371
        %v1381 = vsel %vm1374, %v1377, %v1380
        %v1382 = vsel %vm1372, nan, %v1381
        %v1383 = vand.u32 2147483647, %v245
        %vm1384 = vcmp.le.f32.partialorder %v1383, 0.7853982
        %vm1385 = vcmp.lt.s32.totalorder %v245, 0
        %v1386 = vand.u32 %v245, 2139095040
        %v1387 = vshrl.u32 %v1386, 23
        %v1388 = vsub.s32 %v1387, 127
        %v1389 = vand.u32 2147483647, %v245
        %v1390 = vand.u32 %v1389, 8388607
        %v1391 = vor.u32 %v1390, 8388608
        %v1392 = vsub.s32 0, %v1391
        %v1393 = vadd.s32 %v1388, 1
        %vm1394 = vcmp.gt.s32.totalorder %v1393, 0
        %v1395 = vsel %vm1394, %v1393, 0
        %v1396 = vshrl.u32 %v1395, 5
        %v1397 = vand.u32 %v1395, 31
        %v1398 = vsub.s32 32, %v1397
        %v1399 = vshrl.u32 683565275, %v1398
        %v1400 = vshll.u32 683565275, %v1397
        %v1401 = vshrl.u32 2475754826, %v1398
        %v1402 = vor.u32 %v1400, %v1401
        %v1403 = vshll.u32 2475754826, %v1397
        %v1404 = vshrl.u32 2131351028, %v1398
        %v1405 = vor.u32 %v1403, %v1404
        %v1406 = vshll.u32 2131351028, %v1397
        %v1407 = vshrl.u32 2102212464, %v1398
        %v1408 = vor.u32 %v1406, %v1407
        %v1409 = vshll.u32 2102212464, %v1397
        %v1410 = vshrl.u32 920167782, %v1398
        %v1411 = vor.u32 %v1409, %v1410
        %v1412 = vshll.u32 920167782, %v1397
        %v1413 = vshrl.u32 1326507024, %v1398
        %v1414 = vor.u32 %v1412, %v1413
        %vm1415 = vcmp.lt.s32.totalorder %v1396, 1
        %vm1416 = vcmp.lt.s32.totalorder %v1396, 2
        %vm1417 = vcmp.lt.s32.totalorder %v1396, 3
        %vm1418 = vcmp.lt.s32.totalorder %v1396, 4
        %v1419 = vsel %vm1415, %v1399, %v1402
        %v1420 = vsel %vm1418, %v1408, 2102212464
        %v1421 = vsel %vm1417, %v1405, %v1420
        %v1422 = vsel %vm1416, %v1419, %v1421
        %v1423 = vsel %vm1415, %v1402, %v1405
        %v1424 = vsel %vm1418, %v1411, 920167782
        %v1425 = vsel %vm1417, %v1408, %v1424
        %v1426 = vsel %vm1416, %v1423, %v1425
        %v1427 = vsel %vm1415, %v1405, %v1408
        %v1428 = vsel %vm1418, %v1414, 1326507024
        %v1429 = vsel %vm1417, %v1411, %v1428
        %v1430 = vsel %vm1416, %v1427, %v1429
        %v1431 = vshll.u32 %v1391, 8
        %v1432 = vmul.u32.u64.compose %v1431, %v1430
        %v1433 = vextract.low.u32 %v1432
        %v1434 = vextract.high.u32 %v1432
        %v1435 = vmul.u32.u64.compose %v1431, %v1426
        %v1436 = vextract.low.u32 %v1435
        %v1437 = vextract.high.u32 %v1435
        %v1438 = vmul.u32 %v1431, %v1422
        %v1439 = vadd.s32 %v1434, %v1436
        %vm1440 = vc.u32 %v1434, %v1436
        %v1441 = vadd.s32 %v1437, 1
        %v1442 = vsel %vm1440, %v1441, %v1437
        %v1443 = vadd.s32 %v1438, %v1442
        %v1444 = vadd.s32 %v1443, 536870912
        %v1445 = vshrl.u32 %v1444, 30
        %v1446 = vshll.u32 %v1445, 30
        %v1447 = vsub.s32 %v1443, %v1446
        %vm1448 = vcmp.lt.s32.totalorder %v1447, 0
        %v1449 = vsub.s32 0, %v1447
        %v1450 = vsel %vm1448, %v1449, %v1447
        %v1451 = vclz %v1450
        %v1452 = vsub.s32 %v1451, 2
        %vm1453 = vcmp.gt.s32.totalorder 0, %v1452
        %v1454 = vsel %vm1453, 0, %v1452
        %v1455 = vsub.s32 32, %v1454
        %v1456 = vshll.u32 %v1447, %v1454
        %v1457 = vshrl.u32 %v1439, %v1455
        %v1458 = vor.u32 %v1456, %v1457
        %v1459 = vsub.s32 4294967266, %v1454
        %v1460 = vadd.s32 %v1459, 127
        %v1461 = vshll.u32 %v1460, 23
        %v1462 = vor.u32 4788187, %v1461
        %v1463 = vand.u32 2147483647, %v1462
        %v1465 = vcvt.s32.f32 %v1458
        %v1466 = vmul.f32 %v1465, %v1463
        %v1467 = vxor.u32 %v1466, 2147483648
        %v1468 = vsel %vm1385, %v1467, %v1466
        %v1469 = vsub.s32 4, %v1445
        %v1470 = vsel %vm1385, %v1469, %v1445
        %v1471 = vsel %vm1384, %v245, %v1468
        %v1472 = vsel %vm1384, 0, %v1470
        %v1473 = vcosq.f32.pop %v1471
        %v1474 = vsinq.f32.pop %v1471
        %vm1475 = vweird.f32 %v245
        %v1476 = vand.u32 %v1472, 3
        %vm1477 = vcmp.lt.s32.totalorder %v1476, 2
        %vm1478 = vcmp.eq.s32.totalorder %v1476, 0
        %v1479 = vxor.u32 %v1474, 2147483648
        %v1480 = vsel %vm1478, %v1473, %v1479
        %vm1481 = vcmp.eq.s32.totalorder %v1476, 2
        %v1482 = vxor.u32 %v1473, 2147483648
        %v1483 = vsel %vm1481, %v1482, %v1474
        %v1484 = vsel %vm1477, %v1480, %v1483
        %v1485 = vsel %vm1475, nan, %v1484
        %v1486 = vand.u32 2147483647, %v246
        %vm1487 = vcmp.le.f32.partialorder %v1486, 0.7853982
        %vm1488 = vcmp.lt.s32.totalorder %v246, 0
        %v1489 = vand.u32 %v246, 2139095040
        %v1490 = vshrl.u32 %v1489, 23
        %v1491 = vsub.s32 %v1490, 127
        %v1492 = vand.u32 2147483647, %v246
        %v1493 = vand.u32 %v1492, 8388607
        %v1494 = vor.u32 %v1493, 8388608
        %v1495 = vsub.s32 0, %v1494
        %v1496 = vadd.s32 %v1491, 1
        %vm1497 = vcmp.gt.s32.totalorder %v1496, 0
        %v1498 = vsel %vm1497, %v1496, 0
        %v1499 = vshrl.u32 %v1498, 5
        %v1500 = vand.u32 %v1498, 31
        %v1501 = vsub.s32 32, %v1500
        %v1502 = vshrl.u32 683565275, %v1501
        %v1503 = vshll.u32 683565275, %v1500
        %v1504 = vshrl.u32 2475754826, %v1501
        %v1505 = vor.u32 %v1503, %v1504
        %v1506 = vshll.u32 2475754826, %v1500
        %v1507 = vshrl.u32 2131351028, %v1501
        %v1508 = vor.u32 %v1506, %v1507
        %v1509 = vshll.u32 2131351028, %v1500
        %v1510 = vshrl.u32 2102212464, %v1501
        %v1511 = vor.u32 %v1509, %v1510
        %v1512 = vshll.u32 2102212464, %v1500
        %v1513 = vshrl.u32 920167782, %v1501
        %v1514 = vor.u32 %v1512, %v1513
        %v1515 = vshll.u32 920167782, %v1500
        %v1516 = vshrl.u32 1326507024, %v1501
        %v1517 = vor.u32 %v1515, %v1516
        %vm1518 = vcmp.lt.s32.totalorder %v1499, 1
        %vm1519 = vcmp.lt.s32.totalorder %v1499, 2
        %vm1520 = vcmp.lt.s32.totalorder %v1499, 3
        %vm1521 = vcmp.lt.s32.totalorder %v1499, 4
        %v1522 = vsel %vm1518, %v1502, %v1505
        %v1523 = vsel %vm1521, %v1511, 2102212464
        %v1524 = vsel %vm1520, %v1508, %v1523
        %v1525 = vsel %vm1519, %v1522, %v1524
        %v1526 = vsel %vm1518, %v1505, %v1508
        %v1527 = vsel %vm1521, %v1514, 920167782
        %v1528 = vsel %vm1520, %v1511, %v1527
        %v1529 = vsel %vm1519, %v1526, %v1528
        %v1530 = vsel %vm1518, %v1508, %v1511
        %v1531 = vsel %vm1521, %v1517, 1326507024
        %v1532 = vsel %vm1520, %v1514, %v1531
        %v1533 = vsel %vm1519, %v1530, %v1532
        %v1534 = vshll.u32 %v1494, 8
        %v1535 = vmul.u32.u64.compose %v1534, %v1533
        %v1536 = vextract.low.u32 %v1535
        %v1537 = vextract.high.u32 %v1535
        %v1538 = vmul.u32.u64.compose %v1534, %v1529
        %v1539 = vextract.low.u32 %v1538
        %v1540 = vextract.high.u32 %v1538
        %v1541 = vmul.u32 %v1534, %v1525
        %v1542 = vadd.s32 %v1537, %v1539
        %vm1543 = vc.u32 %v1537, %v1539
        %v1544 = vadd.s32 %v1540, 1
        %v1545 = vsel %vm1543, %v1544, %v1540
        %v1546 = vadd.s32 %v1541, %v1545
        %v1547 = vadd.s32 %v1546, 536870912
        %v1548 = vshrl.u32 %v1547, 30
        %v1549 = vshll.u32 %v1548, 30
        %v1550 = vsub.s32 %v1546, %v1549
        %vm1551 = vcmp.lt.s32.totalorder %v1550, 0
        %v1552 = vsub.s32 0, %v1550
        %v1553 = vsel %vm1551, %v1552, %v1550
        %v1554 = vclz %v1553
        %v1555 = vsub.s32 %v1554, 2
        %vm1556 = vcmp.gt.s32.totalorder 0, %v1555
        %v1557 = vsel %vm1556, 0, %v1555
        %v1558 = vsub.s32 32, %v1557
        %v1559 = vshll.u32 %v1550, %v1557
        %v1560 = vshrl.u32 %v1542, %v1558
        %v1561 = vor.u32 %v1559, %v1560
        %v1562 = vsub.s32 4294967266, %v1557
        %v1563 = vadd.s32 %v1562, 127
        %v1564 = vshll.u32 %v1563, 23
        %v1565 = vor.u32 4788187, %v1564
        %v1566 = vand.u32 2147483647, %v1565
        %v1568 = vcvt.s32.f32 %v1561
        %v1569 = vmul.f32 %v1568, %v1566
        %v1570 = vxor.u32 %v1569, 2147483648
        %v1571 = vsel %vm1488, %v1570, %v1569
        %v1572 = vsub.s32 4, %v1548
        %v1573 = vsel %vm1488, %v1572, %v1548
        %v1574 = vsel %vm1487, %v246, %v1571
        %v1575 = vsel %vm1487, 0, %v1573
        %v1576 = vcosq.f32.pop %v1574
        %v1577 = vsinq.f32.pop %v1574
        %vm1578 = vweird.f32 %v246
        %v1579 = vand.u32 %v1575, 3
        %vm1580 = vcmp.lt.s32.totalorder %v1579, 2
        %vm1581 = vcmp.eq.s32.totalorder %v1579, 0
        %v1582 = vxor.u32 %v1577, 2147483648
        %v1583 = vsel %vm1581, %v1576, %v1582
        %vm1584 = vcmp.eq.s32.totalorder %v1579, 2
        %v1585 = vxor.u32 %v1576, 2147483648
        %v1586 = vsel %vm1584, %v1585, %v1577
        %v1587 = vsel %vm1580, %v1583, %v1586
        %v1588 = vsel %vm1578, nan, %v1587
        %v1589 = vand.u32 2147483647, %v247
        %vm1590 = vcmp.le.f32.partialorder %v1589, 0.7853982
        %vm1591 = vcmp.lt.s32.totalorder %v247, 0
        %v1592 = vand.u32 %v247, 2139095040
        %v1593 = vshrl.u32 %v1592, 23
        %v1594 = vsub.s32 %v1593, 127
        %v1595 = vand.u32 2147483647, %v247
        %v1596 = vand.u32 %v1595, 8388607
        %v1597 = vor.u32 %v1596, 8388608
        %v1598 = vsub.s32 0, %v1597
        %v1599 = vadd.s32 %v1594, 1
        %vm1600 = vcmp.gt.s32.totalorder %v1599, 0
        %v1601 = vsel %vm1600, %v1599, 0
        %v1602 = vshrl.u32 %v1601, 5
        %v1603 = vand.u32 %v1601, 31
        %v1604 = vsub.s32 32, %v1603
        %v1605 = vshrl.u32 683565275, %v1604
        %v1606 = vshll.u32 683565275, %v1603
        %v1607 = vshrl.u32 2475754826, %v1604
        %v1608 = vor.u32 %v1606, %v1607
        %v1609 = vshll.u32 2475754826, %v1603
        %v1610 = vshrl.u32 2131351028, %v1604
        %v1611 = vor.u32 %v1609, %v1610
        %v1612 = vshll.u32 2131351028, %v1603
        %v1613 = vshrl.u32 2102212464, %v1604
        %v1614 = vor.u32 %v1612, %v1613
        %v1615 = vshll.u32 2102212464, %v1603
        %v1616 = vshrl.u32 920167782, %v1604
        %v1617 = vor.u32 %v1615, %v1616
        %v1618 = vshll.u32 920167782, %v1603
        %v1619 = vshrl.u32 1326507024, %v1604
        %v1620 = vor.u32 %v1618, %v1619
        %vm1621 = vcmp.lt.s32.totalorder %v1602, 1
        %vm1622 = vcmp.lt.s32.totalorder %v1602, 2
        %vm1623 = vcmp.lt.s32.totalorder %v1602, 3
        %vm1624 = vcmp.lt.s32.totalorder %v1602, 4
        %v1625 = vsel %vm1621, %v1605, %v1608
        %v1626 = vsel %vm1624, %v1614, 2102212464
        %v1627 = vsel %vm1623, %v1611, %v1626
        %v1628 = vsel %vm1622, %v1625, %v1627
        %v1629 = vsel %vm1621, %v1608, %v1611
        %v1630 = vsel %vm1624, %v1617, 920167782
        %v1631 = vsel %vm1623, %v1614, %v1630
        %v1632 = vsel %vm1622, %v1629, %v1631
        %v1633 = vsel %vm1621, %v1611, %v1614
        %v1634 = vsel %vm1624, %v1620, 1326507024
        %v1635 = vsel %vm1623, %v1617, %v1634
        %v1636 = vsel %vm1622, %v1633, %v1635
        %v1637 = vshll.u32 %v1597, 8
        %v1638 = vmul.u32.u64.compose %v1637, %v1636
        %v1639 = vextract.low.u32 %v1638
        %v1640 = vextract.high.u32 %v1638
        %v1641 = vmul.u32.u64.compose %v1637, %v1632
        %v1642 = vextract.low.u32 %v1641
        %v1643 = vextract.high.u32 %v1641
        %v1644 = vmul.u32 %v1637, %v1628
        %v1645 = vadd.s32 %v1640, %v1642
        %vm1646 = vc.u32 %v1640, %v1642
        %v1647 = vadd.s32 %v1643, 1
        %v1648 = vsel %vm1646, %v1647, %v1643
        %v1649 = vadd.s32 %v1644, %v1648
        %v1650 = vadd.s32 %v1649, 536870912
        %v1651 = vshrl.u32 %v1650, 30
        %v1652 = vshll.u32 %v1651, 30
        %v1653 = vsub.s32 %v1649, %v1652
        %vm1654 = vcmp.lt.s32.totalorder %v1653, 0
        %v1655 = vsub.s32 0, %v1653
        %v1656 = vsel %vm1654, %v1655, %v1653
        %v1657 = vclz %v1656
        %v1658 = vsub.s32 %v1657, 2
        %vm1659 = vcmp.gt.s32.totalorder 0, %v1658
        %v1660 = vsel %vm1659, 0, %v1658
        %v1661 = vsub.s32 32, %v1660
        %v1662 = vshll.u32 %v1653, %v1660
        %v1663 = vshrl.u32 %v1645, %v1661
        %v1664 = vor.u32 %v1662, %v1663
        %v1665 = vsub.s32 4294967266, %v1660
        %v1666 = vadd.s32 %v1665, 127
        %v1667 = vshll.u32 %v1666, 23
        %v1668 = vor.u32 4788187, %v1667
        %v1669 = vand.u32 2147483647, %v1668
        %v1671 = vcvt.s32.f32 %v1664
        %v1672 = vmul.f32 %v1671, %v1669
        %v1673 = vxor.u32 %v1672, 2147483648
        %v1674 = vsel %vm1591, %v1673, %v1672
        %v1675 = vsub.s32 4, %v1651
        %v1676 = vsel %vm1591, %v1675, %v1651
        %v1677 = vsel %vm1590, %v247, %v1674
        %v1678 = vsel %vm1590, 0, %v1676
        %v1679 = vcosq.f32.pop %v1677
        %v1680 = vsinq.f32.pop %v1677
        %vm1681 = vweird.f32 %v247
        %v1682 = vand.u32 %v1678, 3
        %vm1683 = vcmp.lt.s32.totalorder %v1682, 2
        %vm1684 = vcmp.eq.s32.totalorder %v1682, 0
        %v1685 = vxor.u32 %v1680, 2147483648
        %v1686 = vsel %vm1684, %v1679, %v1685
        %vm1687 = vcmp.eq.s32.totalorder %v1682, 2
        %v1688 = vxor.u32 %v1679, 2147483648
        %v1689 = vsel %vm1687, %v1688, %v1680
        %v1690 = vsel %vm1683, %v1686, %v1689
        %v1691 = vsel %vm1681, nan, %v1690
        %v1692 = vand.u32 2147483647, %v248
        %vm1693 = vcmp.le.f32.partialorder %v1692, 0.7853982
        %vm1694 = vcmp.lt.s32.totalorder %v248, 0
        %v1695 = vand.u32 %v248, 2139095040
        %v1696 = vshrl.u32 %v1695, 23
        %v1697 = vsub.s32 %v1696, 127
        %v1698 = vand.u32 2147483647, %v248
        %v1699 = vand.u32 %v1698, 8388607
        %v1700 = vor.u32 %v1699, 8388608
        %v1701 = vsub.s32 0, %v1700
        %v1702 = vadd.s32 %v1697, 1
        %vm1703 = vcmp.gt.s32.totalorder %v1702, 0
        %v1704 = vsel %vm1703, %v1702, 0
        %v1705 = vshrl.u32 %v1704, 5
        %v1706 = vand.u32 %v1704, 31
        %v1707 = vsub.s32 32, %v1706
        %v1708 = vshrl.u32 683565275, %v1707
        %v1709 = vshll.u32 683565275, %v1706
        %v1710 = vshrl.u32 2475754826, %v1707
        %v1711 = vor.u32 %v1709, %v1710
        %v1712 = vshll.u32 2475754826, %v1706
        %v1713 = vshrl.u32 2131351028, %v1707
        %v1714 = vor.u32 %v1712, %v1713
        %v1715 = vshll.u32 2131351028, %v1706
        %v1716 = vshrl.u32 2102212464, %v1707
        %v1717 = vor.u32 %v1715, %v1716
        %v1718 = vshll.u32 2102212464, %v1706
        %v1719 = vshrl.u32 920167782, %v1707
        %v1720 = vor.u32 %v1718, %v1719
        %v1721 = vshll.u32 920167782, %v1706
        %v1722 = vshrl.u32 1326507024, %v1707
        %v1723 = vor.u32 %v1721, %v1722
        %vm1724 = vcmp.lt.s32.totalorder %v1705, 1
        %vm1725 = vcmp.lt.s32.totalorder %v1705, 2
        %vm1726 = vcmp.lt.s32.totalorder %v1705, 3
        %vm1727 = vcmp.lt.s32.totalorder %v1705, 4
        %v1728 = vsel %vm1724, %v1708, %v1711
        %v1729 = vsel %vm1727, %v1717, 2102212464
        %v1730 = vsel %vm1726, %v1714, %v1729
        %v1731 = vsel %vm1725, %v1728, %v1730
        %v1732 = vsel %vm1724, %v1711, %v1714
        %v1733 = vsel %vm1727, %v1720, 920167782
        %v1734 = vsel %vm1726, %v1717, %v1733
        %v1735 = vsel %vm1725, %v1732, %v1734
        %v1736 = vsel %vm1724, %v1714, %v1717
        %v1737 = vsel %vm1727, %v1723, 1326507024
        %v1738 = vsel %vm1726, %v1720, %v1737
        %v1739 = vsel %vm1725, %v1736, %v1738
        %v1740 = vshll.u32 %v1700, 8
        %v1741 = vmul.u32.u64.compose %v1740, %v1739
        %v1742 = vextract.low.u32 %v1741
        %v1743 = vextract.high.u32 %v1741
        %v1744 = vmul.u32.u64.compose %v1740, %v1735
        %v1745 = vextract.low.u32 %v1744
        %v1746 = vextract.high.u32 %v1744
        %v1747 = vmul.u32 %v1740, %v1731
        %v1748 = vadd.s32 %v1743, %v1745
        %vm1749 = vc.u32 %v1743, %v1745
        %v1750 = vadd.s32 %v1746, 1
        %v1751 = vsel %vm1749, %v1750, %v1746
        %v1752 = vadd.s32 %v1747, %v1751
        %v1753 = vadd.s32 %v1752, 536870912
        %v1754 = vshrl.u32 %v1753, 30
        %v1755 = vshll.u32 %v1754, 30
        %v1756 = vsub.s32 %v1752, %v1755
        %vm1757 = vcmp.lt.s32.totalorder %v1756, 0
        %v1758 = vsub.s32 0, %v1756
        %v1759 = vsel %vm1757, %v1758, %v1756
        %v1760 = vclz %v1759
        %v1761 = vsub.s32 %v1760, 2
        %vm1762 = vcmp.gt.s32.totalorder 0, %v1761
        %v1763 = vsel %vm1762, 0, %v1761
        %v1764 = vsub.s32 32, %v1763
        %v1765 = vshll.u32 %v1756, %v1763
        %v1766 = vshrl.u32 %v1748, %v1764
        %v1767 = vor.u32 %v1765, %v1766
        %v1768 = vsub.s32 4294967266, %v1763
        %v1769 = vadd.s32 %v1768, 127
        %v1770 = vshll.u32 %v1769, 23
        %v1771 = vor.u32 4788187, %v1770
        %v1772 = vand.u32 2147483647, %v1771
        %v1774 = vcvt.s32.f32 %v1767
        %v1775 = vmul.f32 %v1774, %v1772
        %v1776 = vxor.u32 %v1775, 2147483648
        %v1777 = vsel %vm1694, %v1776, %v1775
        %v1778 = vsub.s32 4, %v1754
        %v1779 = vsel %vm1694, %v1778, %v1754
        %v1780 = vsel %vm1693, %v248, %v1777
        %v1781 = vsel %vm1693, 0, %v1779
        %v1782 = vcosq.f32.pop %v1780
        %v1783 = vsinq.f32.pop %v1780
        %vm1784 = vweird.f32 %v248
        %v1785 = vand.u32 %v1781, 3
        %vm1786 = vcmp.lt.s32.totalorder %v1785, 2
        %vm1787 = vcmp.eq.s32.totalorder %v1785, 0
        %v1788 = vxor.u32 %v1783, 2147483648
        %v1789 = vsel %vm1787, %v1782, %v1788
        %vm1790 = vcmp.eq.s32.totalorder %v1785, 2
        %v1791 = vxor.u32 %v1782, 2147483648
        %v1792 = vsel %vm1790, %v1791, %v1783
        %v1793 = vsel %vm1786, %v1789, %v1792
        %v1794 = vsel %vm1784, nan, %v1793
        %v1795 = vand.u32 2147483647, %v249
        %vm1796 = vcmp.le.f32.partialorder %v1795, 0.7853982
        %vm1797 = vcmp.lt.s32.totalorder %v249, 0
        %v1798 = vand.u32 %v249, 2139095040
        %v1799 = vshrl.u32 %v1798, 23
        %v1800 = vsub.s32 %v1799, 127
        %v1801 = vand.u32 2147483647, %v249
        %v1802 = vand.u32 %v1801, 8388607
        %v1803 = vor.u32 %v1802, 8388608
        %v1804 = vsub.s32 0, %v1803
        %v1805 = vadd.s32 %v1800, 1
        %vm1806 = vcmp.gt.s32.totalorder %v1805, 0
        %v1807 = vsel %vm1806, %v1805, 0
        %v1808 = vshrl.u32 %v1807, 5
        %v1809 = vand.u32 %v1807, 31
        %v1810 = vsub.s32 32, %v1809
        %v1811 = vshrl.u32 683565275, %v1810
        %v1812 = vshll.u32 683565275, %v1809
        %v1813 = vshrl.u32 2475754826, %v1810
        %v1814 = vor.u32 %v1812, %v1813
        %v1815 = vshll.u32 2475754826, %v1809
        %v1816 = vshrl.u32 2131351028, %v1810
        %v1817 = vor.u32 %v1815, %v1816
        %v1818 = vshll.u32 2131351028, %v1809
        %v1819 = vshrl.u32 2102212464, %v1810
        %v1820 = vor.u32 %v1818, %v1819
        %v1821 = vshll.u32 2102212464, %v1809
        %v1822 = vshrl.u32 920167782, %v1810
        %v1823 = vor.u32 %v1821, %v1822
        %v1824 = vshll.u32 920167782, %v1809
        %v1825 = vshrl.u32 1326507024, %v1810
        %v1826 = vor.u32 %v1824, %v1825
        %vm1827 = vcmp.lt.s32.totalorder %v1808, 1
        %vm1828 = vcmp.lt.s32.totalorder %v1808, 2
        %vm1829 = vcmp.lt.s32.totalorder %v1808, 3
        %vm1830 = vcmp.lt.s32.totalorder %v1808, 4
        %v1831 = vsel %vm1827, %v1811, %v1814
        %v1832 = vsel %vm1830, %v1820, 2102212464
        %v1833 = vsel %vm1829, %v1817, %v1832
        %v1834 = vsel %vm1828, %v1831, %v1833
        %v1835 = vsel %vm1827, %v1814, %v1817
        %v1836 = vsel %vm1830, %v1823, 920167782
        %v1837 = vsel %vm1829, %v1820, %v1836
        %v1838 = vsel %vm1828, %v1835, %v1837
        %v1839 = vsel %vm1827, %v1817, %v1820
        %v1840 = vsel %vm1830, %v1826, 1326507024
        %v1841 = vsel %vm1829, %v1823, %v1840
        %v1842 = vsel %vm1828, %v1839, %v1841
        %v1843 = vshll.u32 %v1803, 8
        %v1844 = vmul.u32.u64.compose %v1843, %v1842
        %v1845 = vextract.low.u32 %v1844
        %v1846 = vextract.high.u32 %v1844
        %v1847 = vmul.u32.u64.compose %v1843, %v1838
        %v1848 = vextract.low.u32 %v1847
        %v1849 = vextract.high.u32 %v1847
        %v1850 = vmul.u32 %v1843, %v1834
        %v1851 = vadd.s32 %v1846, %v1848
        %vm1852 = vc.u32 %v1846, %v1848
        %v1853 = vadd.s32 %v1849, 1
        %v1854 = vsel %vm1852, %v1853, %v1849
        %v1855 = vadd.s32 %v1850, %v1854
        %v1856 = vadd.s32 %v1855, 536870912
        %v1857 = vshrl.u32 %v1856, 30
        %v1858 = vshll.u32 %v1857, 30
        %v1859 = vsub.s32 %v1855, %v1858
        %vm1860 = vcmp.lt.s32.totalorder %v1859, 0
        %v1861 = vsub.s32 0, %v1859
        %v1862 = vsel %vm1860, %v1861, %v1859
        %v1863 = vclz %v1862
        %v1864 = vsub.s32 %v1863, 2
        %vm1865 = vcmp.gt.s32.totalorder 0, %v1864
        %v1866 = vsel %vm1865, 0, %v1864
        %v1867 = vsub.s32 32, %v1866
        %v1868 = vshll.u32 %v1859, %v1866
        %v1869 = vshrl.u32 %v1851, %v1867
        %v1870 = vor.u32 %v1868, %v1869
        %v1871 = vsub.s32 4294967266, %v1866
        %v1872 = vadd.s32 %v1871, 127
        %v1873 = vshll.u32 %v1872, 23
        %v1874 = vor.u32 4788187, %v1873
        %v1875 = vand.u32 2147483647, %v1874
        %v1877 = vcvt.s32.f32 %v1870
        %v1878 = vmul.f32 %v1877, %v1875
        %v1879 = vxor.u32 %v1878, 2147483648
        %v1880 = vsel %vm1797, %v1879, %v1878
        %v1881 = vsub.s32 4, %v1857
        %v1882 = vsel %vm1797, %v1881, %v1857
        %v1883 = vsel %vm1796, %v249, %v1880
        %v1884 = vsel %vm1796, 0, %v1882
        %v1885 = vcosq.f32.pop %v1883
        %v1886 = vsinq.f32.pop %v1883
        %vm1887 = vweird.f32 %v249
        %v1888 = vand.u32 %v1884, 3
        %vm1889 = vcmp.lt.s32.totalorder %v1888, 2
        %vm1890 = vcmp.eq.s32.totalorder %v1888, 0
        %v1891 = vxor.u32 %v1886, 2147483648
        %v1892 = vsel %vm1890, %v1885, %v1891
        %vm1893 = vcmp.eq.s32.totalorder %v1888, 2
        %v1894 = vxor.u32 %v1885, 2147483648
        %v1895 = vsel %vm1893, %v1894, %v1886
        %v1896 = vsel %vm1889, %v1892, %v1895
        %v1897 = vsel %vm1887, nan, %v1896
        %1898 = vst [vmem:[%s137] sm:$0xff] %v352
        %1899 = vst [vmem:[%s137 + $0x8] sm:$0xff] %v455
        %1900 = vst [vmem:[%s137 + $0x10] sm:$0xff] %v558
        %1901 = vst [vmem:[%s137 + $0x18] sm:$0xff] %v661
        %1902 = vst [vmem:[%s137 + $0x20] sm:$0xff] %v764
        %1903 = vst [vmem:[%s137 + $0x28] sm:$0xff] %v867
        %1904 = vst [vmem:[%s137 + $0x30] sm:$0xff] %v970
        %1905 = vst [vmem:[%s137 + $0x38] sm:$0xff] %v1073
        %1906 = vst [vmem:[%s137 + $0x40] sm:$0xff] %v1176
        %1907 = vst [vmem:[%s137 + $0x48] sm:$0xff] %v1279
        %1908 = vst [vmem:[%s137 + $0x50] sm:$0xff] %v1382
        %1909 = vst [vmem:[%s137 + $0x58] sm:$0xff] %v1485
        %1910 = vst [vmem:[%s137 + $0x60] sm:$0xff] %v1588
        %1911 = vst [vmem:[%s137 + $0x68] sm:$0xff] %v1691
        %1912 = vst [vmem:[%s137 + $0x70] sm:$0xff] %v1794
        %1913 = vst [vmem:[%s137 + $0x78] sm:$0xff] %v1897
        %vm1914 = vcmask 7168
        %1915 = vst.msk [vmem:[%s137] sm:$0xff] %vm1914, %v234
        %1916 = vst.msk [vmem:[%s137 + $0x10] sm:$0xff] %vm1914, %v236
        %1917 = vst.msk [vmem:[%s137 + $0x20] sm:$0xff] %vm1914, %v238
        %1918 = vst.msk [vmem:[%s137 + $0x30] sm:$0xff] %vm1914, %v240
        %1919 = vst.msk [vmem:[%s137 + $0x40] sm:$0xff] %vm1914, %v242
        %1920 = vst.msk [vmem:[%s137 + $0x50] sm:$0xff] %vm1914, %v244
        %1921 = vst.msk [vmem:[%s137 + $0x60] sm:$0xff] %vm1914, %v246
        %1922 = vst.msk [vmem:[%s137 + $0x70] sm:$0xff] %vm1914, %v248
        %s1923 = sand.u32 %s71, 1
        %s1924 = scalar_lea.sflag [#allocation3], %s1923
        %s1925 = sand.u32 %s71, 1
        %s1926 = smul.addr %s1925, 128
        %s1927 = scalar_lea.vmem [#allocation2], %s1926
        // Predicated region
        $region29: #{tpu_custom_call.1} parent=27 // pred_check
          %p1928 = pneg %p81
        $region30: #{tpu_custom_call.1} parent=27 // pred_check_branch
          %1930 = sbr.rel (%p1928) target = $region32
        $region31: #{tpu_custom_call.1} parent=27 // pred_region
          %s1931 = smul.u32 8, %s16
          %s1933 = ssub.s32 2048, 2048
          %1934 = vsyncadd %s1924, %s1933
          %s1935 = smul.addr %s1931, 2
          %s1936 = smul.addr %s1935, 128
          %s1937 = scalar_lea.hbm %s2, %s1936
          %s1938 = sshll.u32 %s1927, 4
          %s1939 = int_to_ptr.vmem [resolvable:$true] %s1938
          %1944 = dma.vmem_to_hbm [thread:$0]  %s1939, 2048, %s1937, %s1924, 256, 256, 16
        $region32: #{tpu_custom_call.1} parent=27 // pred_fallthru
          _
      $region28: #{tpu_custom_call.1} parent=5 // pred_fallthru
        _
      %p1945 = scmp.le.s32.totalorder 2, %s11
      // Predicated region
      $region33: #{tpu_custom_call.1} parent=5 // pred_check
        %p1946 = pneg %p1945
      $region34: #{tpu_custom_call.1} parent=5 // pred_check_branch
        %1948 = sbr.rel (%p1946) target = $region36
      $region35: #{tpu_custom_call.1} parent=5 // pred_region
        %s1949 = ssub.s32 %s11, 2
        // Predicated region
        $region37: #{tpu_custom_call.1} parent=35 // pred_check
          %p1950 = pneg %p87
        $region38: #{tpu_custom_call.1} parent=35 // pred_check_branch
          %1952 = sbr.rel (%p1950) target = $region40
        $region39: #{tpu_custom_call.1} parent=35 // pred_region
          %s1953 = sand.u32 %s72, 1
          %s1954 = scalar_lea.sflag [#allocation3], %s1953
          %s1955 = sand.u32 %s72, 1
          %s1956 = smul.addr %s1955, 128
          %s1957 = scalar_lea.vmem [#allocation2], %s1956
          %1958 = dma.done %s1954, 2048
        $region40: #{tpu_custom_call.1} parent=35 // pred_fallthru
          _
      $region36: #{tpu_custom_call.1} parent=5 // pred_fallthru
        _
    $region6: #{tpu_custom_call.1} parent=1 // loop_footer
      %s15 = sadd.s32 1, %s11
    $region7: #{tpu_custom_call.1} parent=1 // loop_footer_branch
      %10 = sbr.rel target = $region3
    $region8: #{tpu_custom_call.1} parent=1 // loop_exit
      _
    %1959 = vsyncpa [#allocation3], 1
    %s1960 = scalar_lea.sflag [#allocation3], 1
    %1961 = vsyncpa %s1960, 1

</llo_original>
